<compile_context>
chip_gen: v5e
topology: v5e:2x2
jax: 0.10.0
libtpu: 0.0.40
codegen_flags: <defaults>
</compile_context>

<pallas_src>
import jax
import jax.numpy as jnp
from jax import lax
from jax.experimental import pallas as pl
from jax.experimental.pallas import tpu as pltpu

H = W = 8                  # spatial size implied by fc = Linear(2*8*8, 3)
HW = H * W                 # 64
PG = 10                    # padded board side (8 + 2*pad)
P = 104                    # flattened padded board (100) rounded up to a multiple of 8
MARGIN = 24                # >= max tap offset (22), multiple of 8
EPS = 1e-5
TAP_OFFS = tuple(dy * PG + dx for dy in range(3) for dx in range(3))  # k = dy*3 + dx


def _make_kernel(TB, Cin):
    MROWS = TB * P - MARGIN   # rows of activations carried per grid step

    def kernel(x_ref, w1_ref, b1_ref, w2_ref, b2_ref, afc_ref, bfc_ref, o_ref):
        # x_ref:   (TB*P, Cin)   flattened zero-padded boards for TB batch elems
        # w1_ref:  (9, Cin, 32)  conv1 taps (BN1 scale folded in)
        # b1_ref:  (1, 32)       folded conv1-bias + BN1
        # w2_ref:  (32, 2)       conv2 1x1 (BN2 scale folded in)
        # b2_ref:  (1, 2)        folded conv2-bias + BN2
        # afc_ref: (2, MROWS, 3) per-row FC weights (zero on pad/garbage rows)
        # bfc_ref: (1, 3)
        # o_ref:   (TB, 3)

        # conv1 (3x3, pad=1): 9 shifted slices of the flattened padded grid,
        # accumulated through the MXU.  Row r <-> batch r//P, grid position r%P.
        acc = jnp.dot(x_ref[pl.ds(TAP_OFFS[0], MROWS), :], w1_ref[0],
                      preferred_element_type=jnp.float32)
        for k in range(1, 9):
            acc = acc + jnp.dot(x_ref[pl.ds(TAP_OFFS[k], MROWS), :], w1_ref[k],
                                preferred_element_type=jnp.float32)
        h1 = jnp.maximum(acc + b1_ref[...], 0.0)                      # (MROWS, 32)

        # conv2 (1x1) + folded BN2 + ReLU
        h2 = jnp.dot(h1, w2_ref[...], preferred_element_type=jnp.float32)
        h2 = jnp.maximum(h2 + b2_ref[...], 0.0)                       # (MROWS, 2)

        # FC: weight rows by their position-dependent FC coefficients (VPU),
        # then reduce each batch element's P rows with a single MXU matmul.
        rw = h2[:, 0:1] * afc_ref[0] + h2[:, 1:2] * afc_ref[1]        # (MROWS, 3)
        row = lax.broadcasted_iota(jnp.int32, (TB, MROWS), 1)
        bat = lax.broadcasted_iota(jnp.int32, (TB, MROWS), 0)
        sel = jnp.logical_and(row >= bat * P, row < (bat + 1) * P)
        sel = sel.astype(jnp.float32)                                 # (TB, MROWS)
        o_ref[...] = (jnp.dot(sel, rw, preferred_element_type=jnp.float32)
                      + bfc_ref[...])

    return kernel, MROWS


def value_head_forward(x_nchw, params, tile_b=16):
    """x_nchw: (B, Cin, 8, 8) float32 -> (B, 3) float32 (eval-mode BN)."""
    B, Cin, h, w = x_nchw.shape
    assert (h, w) == (H, W)

    # Batch tile size: one grid step handles TB batch elements.
    if B <= tile_b:
        TB = B
    else:
        assert tile_b % 8 == 0, "tile_b must be a multiple of 8 when B > tile_b"
        TB = tile_b
    NB = pl.cdiv(B, TB)
    Bpad = NB * TB

    kernel, MROWS = _make_kernel(TB, Cin)

    # ---- layout: NCHW -> zero-padded 10x10 board, flattened (Bpad*P, Cin) ----
    x = jnp.transpose(x_nchw, (0, 2, 3, 1)).astype(jnp.float32)       # (B, 8, 8, Cin)
    x = jnp.pad(x, ((0, Bpad - B), (1, 1), (1, 1), (0, 0)))           # (Bpad, 10, 10, Cin)
    x = x.reshape(Bpad, PG * PG, Cin)
    x = jnp.pad(x, ((0, 0), (0, P - PG * PG), (0, 0)))                # (Bpad, P, Cin)
    x2d = x.reshape(Bpad * P, Cin)

    # ---- fold eval-mode BN (+conv bias) into the matmul weights ----
    w1, b1 = params["w1"], params["b1"]                               # (32,Cin,3,3), (32,)
    g1, beta1, rm1, rv1 = params["g1"], params["beta1"], params["rm1"], params["rv1"]
    w2, b2 = params["w2"], params["b2"]                               # (2,32,1,1), (2,)
    g2, beta2, rm2, rv2 = params["g2"], params["beta2"], params["rm2"], params["rv2"]
    wfc, bfc = params["wfc"], params["bfc"]                           # (3,128), (3,)

    s1 = g1 * lax.rsqrt(rv1 + EPS)                                    # (32,)
    b1f = (s1 * (b1 - rm1) + beta1).reshape(1, 32).astype(jnp.float32)
    w1f = (jnp.transpose(w1, (2, 3, 1, 0)).reshape(9, Cin, 32) * s1)  # (9, Cin, 32)
    w1f = w1f.astype(jnp.float32)

    s2 = g2 * lax.rsqrt(rv2 + EPS)                                    # (2,)
    b2f = (s2 * (b2 - rm2) + beta2).reshape(1, 2).astype(jnp.float32)
    w2f = (w2.reshape(2, 32).T * s2).astype(jnp.float32)              # (32, 2)

    # ---- per-row FC weight table (zero on padding / garbage rows) ----
    # Kernel row r has padded-grid position q = r % P; valid outputs are
    # q = h*10 + w with h, w < 8, mapping to PyTorch's NCHW flatten c*64+h*8+w.
    ridx = jnp.arange(MROWS)
    q = ridx % P
    qh, qw = q // PG, q % PG
    valid = (qh < H) & (qw < W)
    sidx = jnp.where(valid, qh * W + qw, 0)                           # (MROWS,)
    wfc_cst = jnp.transpose(wfc.reshape(3, 2, HW), (1, 2, 0))         # (2, 64, 3) = [c, s, t]
    afc = jnp.where(valid[None, :, None], wfc_cst[:, sidx, :], 0.0)   # (2, MROWS, 3)
    afc = afc.astype(jnp.float32)
    bfc2 = bfc.reshape(1, 3).astype(jnp.float32)

    out = pl.pallas_call(
        kernel,
        out_shape=jax.ShapeDtypeStruct((Bpad, 3), jnp.float32),
        grid=(NB,),
        in_specs=[
            pl.BlockSpec((TB * P, Cin), lambda i: (i, 0)),
            pl.BlockSpec((9, Cin, 32), lambda i: (0, 0, 0)),
            pl.BlockSpec((1, 32), lambda i: (0, 0)),
            pl.BlockSpec((32, 2), lambda i: (0, 0)),
            pl.BlockSpec((1, 2), lambda i: (0, 0)),
            pl.BlockSpec((2, MROWS, 3), lambda i: (0, 0, 0)),
            pl.BlockSpec((1, 3), lambda i: (0, 0)),
        ],
        out_specs=pl.BlockSpec((TB, 3), lambda i: (i, 0)),
        compiler_params=pltpu.CompilerParams(dimension_semantics=("parallel",)),
    )(x2d, w1f, b1f, w2f, b2f, afc, bfc2)

    return out[:B]


def value_head_reference(x_nchw, params):
    """Pure-JAX reference mirroring the PyTorch forward (eval-mode BN)."""
    B = x_nchw.shape[0]
    x = jnp.transpose(x_nchw, (0, 2, 3, 1))                           # NHWC
    y = lax.conv_general_dilated(
        x, jnp.transpose(params["w1"], (2, 3, 1, 0)), (1, 1), "SAME",
        dimension_numbers=("NHWC", "HWIO", "NHWC")) + params["b1"]
    y = (y - params["rm1"]) / jnp.sqrt(params["rv1"] + EPS) * params["g1"] + params["beta1"]
    y = jnp.maximum(y, 0.0)
    y = lax.conv_general_dilated(
        y, jnp.transpose(params["w2"], (2, 3, 1, 0)), (1, 1), "SAME",
        dimension_numbers=("NHWC", "HWIO", "NHWC")) + params["b2"]
    y = (y - params["rm2"]) / jnp.sqrt(params["rv2"] + EPS) * params["g2"] + params["beta2"]
    y = jnp.maximum(y, 0.0)
    flat = jnp.transpose(y, (0, 3, 1, 2)).reshape(B, -1)              # NCHW flatten (c*64 + s)
    return flat @ params["wfc"].T + params["bfc"]


def make_params(key, in_channels):
    ks = jax.random.split(key, 14)
    f32 = jnp.float32
    return {
        "w1": 0.1 * jax.random.normal(ks[0], (32, in_channels, 3, 3), f32),
        "b1": 0.1 * jax.random.normal(ks[1], (32,), f32),
        "g1": 1.0 + 0.1 * jax.random.normal(ks[2], (32,), f32),
        "beta1": 0.1 * jax.random.normal(ks[3], (32,), f32),
        "rm1": 0.1 * jax.random.normal(ks[4], (32,), f32),
        "rv1": 0.5 + jnp.abs(jax.random.normal(ks[5], (32,), f32)),
        "w2": 0.1 * jax.random.normal(ks[6], (2, 32, 1, 1), f32),
        "b2": 0.1 * jax.random.normal(ks[7], (2,), f32),
        "g2": 1.0 + 0.1 * jax.random.normal(ks[8], (2,), f32),
        "beta2": 0.1 * jax.random.normal(ks[9], (2,), f32),
        "rm2": 0.1 * jax.random.normal(ks[10], (2,), f32),
        "rv2": 0.5 + jnp.abs(jax.random.normal(ks[11], (2,), f32)),
        "wfc": 0.1 * jax.random.normal(ks[12], (3, 2 * H * W), f32),
        "bfc": 0.1 * jax.random.normal(ks[13], (3,), f32),
    }


if __name__ == "__main__":
    B, Cin = 2, 4
    key = jax.random.PRNGKey(0)
    kx, kp = jax.random.split(key)
    x = jax.random.normal(kx, (B, Cin, H, W), jnp.float32)   # NCHW, like PyTorch
    params = make_params(kp, Cin)

    out = jax.block_until_ready(value_head_forward(x, params))
    ref = jax.block_until_ready(value_head_reference(x, params))

    assert out.shape == (B, 3), out.shape
    assert jnp.allclose(out, ref, rtol=1e-4, atol=1e-4), (out, ref)
    print("KERNEL_OK")
</pallas_src>

<mosaic_0001>
module attributes {stable_mosaic.version = 11 : i64} {
  func.func @kernel(%arg0: i32, %arg1: memref<208x4xf32, #tpu.memory_space<vmem>>, %arg2: memref<9x4x32xf32, #tpu.memory_space<vmem>>, %arg3: memref<1x32xf32, #tpu.memory_space<vmem>>, %arg4: memref<32x2xf32, #tpu.memory_space<vmem>>, %arg5: memref<1x2xf32, #tpu.memory_space<vmem>>, %arg6: memref<2x184x3xf32, #tpu.memory_space<vmem>>, %arg7: memref<1x3xf32, #tpu.memory_space<vmem>>, %arg8: memref<2x3xf32, #tpu.memory_space<vmem>>) attributes {dimension_semantics = [#tpu.dimension_semantics<parallel>], iteration_bounds = array<i64: 1>, scalar_prefetch = 0 : i64, scratch_operands = 0 : i64, tpu.core_type = #tpu.core_type<tc>, window_params = [{transform_indices = @transform_0, window_bounds = array<i64: 208, 4>}, {pipeline_mode = #tpu.pipeline_mode<synchronous>, transform_indices = @transform_1, window_bounds = array<i64: 9, 4, 32>}, {pipeline_mode = #tpu.pipeline_mode<synchronous>, transform_indices = @transform_2, window_bounds = array<i64: 1, 32>}, {pipeline_mode = #tpu.pipeline_mode<synchronous>, transform_indices = @transform_3, window_bounds = array<i64: 32, 2>}, {pipeline_mode = #tpu.pipeline_mode<synchronous>, transform_indices = @transform_4, window_bounds = array<i64: 1, 2>}, {pipeline_mode = #tpu.pipeline_mode<synchronous>, transform_indices = @transform_5, window_bounds = array<i64: 2, 184, 3>}, {pipeline_mode = #tpu.pipeline_mode<synchronous>, transform_indices = @transform_6, window_bounds = array<i64: 1, 3>}, {transform_indices = @transform_7, window_bounds = array<i64: 2, 3>}]} {
    %c0 = arith.constant 0 : index
    %c0_0 = arith.constant 0 : index
    %0 = vector.load %arg1[%c0, %c0_0] : memref<208x4xf32, #tpu.memory_space<vmem>>, vector<184x4xf32>
    %c0_1 = arith.constant 0 : index
    %c0_2 = arith.constant 0 : index
    %c0_3 = arith.constant 0 : index
    %1 = vector.load %arg2[%c0_1, %c0_2, %c0_3] : memref<9x4x32xf32, #tpu.memory_space<vmem>>, vector<1x4x32xf32>
    %2 = vector.shape_cast %1 : vector<1x4x32xf32> to vector<4x32xf32>
    %cst = arith.constant dense<0.000000e+00> : vector<184x32xf32>
    %3 = tpu.matmul %0, %2, %cst {dimension_numbers = #tpu.dot_dimension_numbers<[1], [0], [0], [1], [0, 0, 1, 1], [], []>} : vector<184x4xf32>, vector<4x32xf32>, vector<184x32xf32> -> vector<184x32xf32>
    %c1 = arith.constant 1 : index
    %c0_4 = arith.constant 0 : index
    %4 = vector.load %arg1[%c1, %c0_4] : memref<208x4xf32, #tpu.memory_space<vmem>>, vector<184x4xf32>
    %c1_5 = arith.constant 1 : index
    %c0_6 = arith.constant 0 : index
    %c0_7 = arith.constant 0 : index
    %5 = vector.load %arg2[%c1_5, %c0_6, %c0_7] : memref<9x4x32xf32, #tpu.memory_space<vmem>>, vector<1x4x32xf32>
    %6 = vector.shape_cast %5 : vector<1x4x32xf32> to vector<4x32xf32>
    %cst_8 = arith.constant dense<0.000000e+00> : vector<184x32xf32>
    %7 = tpu.matmul %4, %6, %cst_8 {dimension_numbers = #tpu.dot_dimension_numbers<[1], [0], [0], [1], [0, 0, 1, 1], [], []>} : vector<184x4xf32>, vector<4x32xf32>, vector<184x32xf32> -> vector<184x32xf32>
    %8 = arith.addf %3, %7 : vector<184x32xf32>
    %c2 = arith.constant 2 : index
    %c0_9 = arith.constant 0 : index
    %9 = vector.load %arg1[%c2, %c0_9] : memref<208x4xf32, #tpu.memory_space<vmem>>, vector<184x4xf32>
    %c2_10 = arith.constant 2 : index
    %c0_11 = arith.constant 0 : index
    %c0_12 = arith.constant 0 : index
    %10 = vector.load %arg2[%c2_10, %c0_11, %c0_12] : memref<9x4x32xf32, #tpu.memory_space<vmem>>, vector<1x4x32xf32>
    %11 = vector.shape_cast %10 : vector<1x4x32xf32> to vector<4x32xf32>
    %cst_13 = arith.constant dense<0.000000e+00> : vector<184x32xf32>
    %12 = tpu.matmul %9, %11, %cst_13 {dimension_numbers = #tpu.dot_dimension_numbers<[1], [0], [0], [1], [0, 0, 1, 1], [], []>} : vector<184x4xf32>, vector<4x32xf32>, vector<184x32xf32> -> vector<184x32xf32>
    %13 = arith.addf %8, %12 : vector<184x32xf32>
    %c10 = arith.constant 10 : index
    %c0_14 = arith.constant 0 : index
    %14 = vector.load %arg1[%c10, %c0_14] : memref<208x4xf32, #tpu.memory_space<vmem>>, vector<184x4xf32>
    %c3 = arith.constant 3 : index
    %c0_15 = arith.constant 0 : index
    %c0_16 = arith.constant 0 : index
    %15 = vector.load %arg2[%c3, %c0_15, %c0_16] : memref<9x4x32xf32, #tpu.memory_space<vmem>>, vector<1x4x32xf32>
    %16 = vector.shape_cast %15 : vector<1x4x32xf32> to vector<4x32xf32>
    %cst_17 = arith.constant dense<0.000000e+00> : vector<184x32xf32>
    %17 = tpu.matmul %14, %16, %cst_17 {dimension_numbers = #tpu.dot_dimension_numbers<[1], [0], [0], [1], [0, 0, 1, 1], [], []>} : vector<184x4xf32>, vector<4x32xf32>, vector<184x32xf32> -> vector<184x32xf32>
    %18 = arith.addf %13, %17 : vector<184x32xf32>
    %c11 = arith.constant 11 : index
    %c0_18 = arith.constant 0 : index
    %19 = vector.load %arg1[%c11, %c0_18] : memref<208x4xf32, #tpu.memory_space<vmem>>, vector<184x4xf32>
    %c4 = arith.constant 4 : index
    %c0_19 = arith.constant 0 : index
    %c0_20 = arith.constant 0 : index
    %20 = vector.load %arg2[%c4, %c0_19, %c0_20] : memref<9x4x32xf32, #tpu.memory_space<vmem>>, vector<1x4x32xf32>
    %21 = vector.shape_cast %20 : vector<1x4x32xf32> to vector<4x32xf32>
    %cst_21 = arith.constant dense<0.000000e+00> : vector<184x32xf32>
    %22 = tpu.matmul %19, %21, %cst_21 {dimension_numbers = #tpu.dot_dimension_numbers<[1], [0], [0], [1], [0, 0, 1, 1], [], []>} : vector<184x4xf32>, vector<4x32xf32>, vector<184x32xf32> -> vector<184x32xf32>
    %23 = arith.addf %18, %22 : vector<184x32xf32>
    %c12 = arith.constant 12 : index
    %c0_22 = arith.constant 0 : index
    %24 = vector.load %arg1[%c12, %c0_22] : memref<208x4xf32, #tpu.memory_space<vmem>>, vector<184x4xf32>
    %c5 = arith.constant 5 : index
    %c0_23 = arith.constant 0 : index
    %c0_24 = arith.constant 0 : index
    %25 = vector.load %arg2[%c5, %c0_23, %c0_24] : memref<9x4x32xf32, #tpu.memory_space<vmem>>, vector<1x4x32xf32>
    %26 = vector.shape_cast %25 : vector<1x4x32xf32> to vector<4x32xf32>
    %cst_25 = arith.constant dense<0.000000e+00> : vector<184x32xf32>
    %27 = tpu.matmul %24, %26, %cst_25 {dimension_numbers = #tpu.dot_dimension_numbers<[1], [0], [0], [1], [0, 0, 1, 1], [], []>} : vector<184x4xf32>, vector<4x32xf32>, vector<184x32xf32> -> vector<184x32xf32>
    %28 = arith.addf %23, %27 : vector<184x32xf32>
    %c20 = arith.constant 20 : index
    %c0_26 = arith.constant 0 : index
    %29 = vector.load %arg1[%c20, %c0_26] : memref<208x4xf32, #tpu.memory_space<vmem>>, vector<184x4xf32>
    %c6 = arith.constant 6 : index
    %c0_27 = arith.constant 0 : index
    %c0_28 = arith.constant 0 : index
    %30 = vector.load %arg2[%c6, %c0_27, %c0_28] : memref<9x4x32xf32, #tpu.memory_space<vmem>>, vector<1x4x32xf32>
    %31 = vector.shape_cast %30 : vector<1x4x32xf32> to vector<4x32xf32>
    %cst_29 = arith.constant dense<0.000000e+00> : vector<184x32xf32>
    %32 = tpu.matmul %29, %31, %cst_29 {dimension_numbers = #tpu.dot_dimension_numbers<[1], [0], [0], [1], [0, 0, 1, 1], [], []>} : vector<184x4xf32>, vector<4x32xf32>, vector<184x32xf32> -> vector<184x32xf32>
    %33 = arith.addf %28, %32 : vector<184x32xf32>
    %c21 = arith.constant 21 : index
    %c0_30 = arith.constant 0 : index
    %34 = vector.load %arg1[%c21, %c0_30] : memref<208x4xf32, #tpu.memory_space<vmem>>, vector<184x4xf32>
    %c7 = arith.constant 7 : index
    %c0_31 = arith.constant 0 : index
    %c0_32 = arith.constant 0 : index
    %35 = vector.load %arg2[%c7, %c0_31, %c0_32] : memref<9x4x32xf32, #tpu.memory_space<vmem>>, vector<1x4x32xf32>
    %36 = vector.shape_cast %35 : vector<1x4x32xf32> to vector<4x32xf32>
    %cst_33 = arith.constant dense<0.000000e+00> : vector<184x32xf32>
    %37 = tpu.matmul %34, %36, %cst_33 {dimension_numbers = #tpu.dot_dimension_numbers<[1], [0], [0], [1], [0, 0, 1, 1], [], []>} : vector<184x4xf32>, vector<4x32xf32>, vector<184x32xf32> -> vector<184x32xf32>
    %38 = arith.addf %33, %37 : vector<184x32xf32>
    %c22 = arith.constant 22 : index
    %c0_34 = arith.constant 0 : index
    %39 = vector.load %arg1[%c22, %c0_34] : memref<208x4xf32, #tpu.memory_space<vmem>>, vector<184x4xf32>
    %c8 = arith.constant 8 : index
    %c0_35 = arith.constant 0 : index
    %c0_36 = arith.constant 0 : index
    %40 = vector.load %arg2[%c8, %c0_35, %c0_36] : memref<9x4x32xf32, #tpu.memory_space<vmem>>, vector<1x4x32xf32>
    %41 = vector.shape_cast %40 : vector<1x4x32xf32> to vector<4x32xf32>
    %cst_37 = arith.constant dense<0.000000e+00> : vector<184x32xf32>
    %42 = tpu.matmul %39, %41, %cst_37 {dimension_numbers = #tpu.dot_dimension_numbers<[1], [0], [0], [1], [0, 0, 1, 1], [], []>} : vector<184x4xf32>, vector<4x32xf32>, vector<184x32xf32> -> vector<184x32xf32>
    %43 = arith.addf %38, %42 : vector<184x32xf32>
    %c0_38 = arith.constant 0 : index
    %c0_39 = arith.constant 0 : index
    %44 = vector.load %arg3[%c0_38, %c0_39] : memref<1x32xf32, #tpu.memory_space<vmem>>, vector<1x32xf32>
    %45 = vector.broadcast %44 : vector<1x32xf32> to vector<184x32xf32>
    %46 = arith.addf %43, %45 : vector<184x32xf32>
    %cst_40 = arith.constant 0.000000e+00 : f32
    %47 = vector.broadcast %cst_40 : f32 to vector<184x32xf32>
    %48 = arith.maximumf %46, %47 : vector<184x32xf32>
    %c0_41 = arith.constant 0 : index
    %c0_42 = arith.constant 0 : index
    %49 = vector.load %arg4[%c0_41, %c0_42] : memref<32x2xf32, #tpu.memory_space<vmem>>, vector<32x2xf32>
    %cst_43 = arith.constant dense<0.000000e+00> : vector<184x2xf32>
    %50 = tpu.matmul %48, %49, %cst_43 {dimension_numbers = #tpu.dot_dimension_numbers<[1], [0], [0], [1], [0, 0, 1, 1], [], []>} : vector<184x32xf32>, vector<32x2xf32>, vector<184x2xf32> -> vector<184x2xf32>
    %c0_44 = arith.constant 0 : index
    %c0_45 = arith.constant 0 : index
    %51 = vector.load %arg5[%c0_44, %c0_45] : memref<1x2xf32, #tpu.memory_space<vmem>>, vector<1x2xf32>
    %52 = vector.broadcast %51 : vector<1x2xf32> to vector<184x2xf32>
    %53 = arith.addf %50, %52 : vector<184x2xf32>
    %cst_46 = arith.constant 0.000000e+00 : f32
    %54 = vector.broadcast %cst_46 : f32 to vector<184x2xf32>
    %55 = arith.maximumf %53, %54 : vector<184x2xf32>
    %56 = vector.extract_strided_slice %55 {offsets = [0, 0], sizes = [184, 1], strides = [1, 1]} : vector<184x2xf32> to vector<184x1xf32>
    %c0_47 = arith.constant 0 : index
    %c0_48 = arith.constant 0 : index
    %c0_49 = arith.constant 0 : index
    %57 = vector.load %arg6[%c0_47, %c0_48, %c0_49] : memref<2x184x3xf32, #tpu.memory_space<vmem>>, vector<1x184x3xf32>
    %58 = vector.shape_cast %57 : vector<1x184x3xf32> to vector<184x3xf32>
    %59 = vector.broadcast %56 : vector<184x1xf32> to vector<184x3xf32>
    %60 = arith.mulf %59, %58 : vector<184x3xf32>
    %61 = vector.extract_strided_slice %55 {offsets = [0, 1], sizes = [184, 1], strides = [1, 1]} : vector<184x2xf32> to vector<184x1xf32>
    %c1_50 = arith.constant 1 : index
    %c0_51 = arith.constant 0 : index
    %c0_52 = arith.constant 0 : index
    %62 = vector.load %arg6[%c1_50, %c0_51, %c0_52] : memref<2x184x3xf32, #tpu.memory_space<vmem>>, vector<1x184x3xf32>
    %63 = vector.shape_cast %62 : vector<1x184x3xf32> to vector<184x3xf32>
    %64 = vector.broadcast %61 : vector<184x1xf32> to vector<184x3xf32>
    %65 = arith.mulf %64, %63 : vector<184x3xf32>
    %66 = arith.addf %60, %65 : vector<184x3xf32>
    %67 = tpu.iota {dimensions = array<i32: 1>} : vector<2x184xi32>
    %68 = tpu.iota {dimensions = array<i32: 0>} : vector<2x184xi32>
    %c104_i32 = arith.constant 104 : i32
    %69 = vector.broadcast %c104_i32 : i32 to vector<2x184xi32>
    %70 = arith.muli %68, %69 : vector<2x184xi32>
    %71 = arith.cmpi sge, %67, %70 : vector<2x184xi32>
    %c1_i32 = arith.constant 1 : i32
    %72 = vector.broadcast %c1_i32 : i32 to vector<2x184xi32>
    %73 = arith.addi %68, %72 : vector<2x184xi32>
    %c104_i32_53 = arith.constant 104 : i32
    %74 = vector.broadcast %c104_i32_53 : i32 to vector<2x184xi32>
    %75 = arith.muli %73, %74 : vector<2x184xi32>
    %76 = arith.cmpi slt, %67, %75 : vector<2x184xi32>
    %77 = arith.andi %71, %76 : vector<2x184xi1>
    %78 = arith.extui %77 : vector<2x184xi1> to vector<2x184xi32>
    %79 = arith.sitofp %78 : vector<2x184xi32> to vector<2x184xf32>
    %cst_54 = arith.constant dense<0.000000e+00> : vector<2x3xf32>
    %80 = tpu.matmul %79, %66, %cst_54 {dimension_numbers = #tpu.dot_dimension_numbers<[1], [0], [0], [1], [0, 0, 1, 1], [], []>} : vector<2x184xf32>, vector<184x3xf32>, vector<2x3xf32> -> vector<2x3xf32>
    %c0_55 = arith.constant 0 : index
    %c0_56 = arith.constant 0 : index
    %81 = vector.load %arg7[%c0_55, %c0_56] : memref<1x3xf32, #tpu.memory_space<vmem>>, vector<1x3xf32>
    %82 = vector.broadcast %81 : vector<1x3xf32> to vector<2x3xf32>
    %83 = arith.addf %80, %82 : vector<2x3xf32>
    %c0_57 = arith.constant 0 : index
    %c0_58 = arith.constant 0 : index
    %84 = vector.load %arg8[%c0_57, %c0_58] : memref<2x3xf32, #tpu.memory_space<vmem>>, vector<2x3xf32>
    tpu.vector_store %arg8[%c0_57, %c0_58], %83 {strides = array<i32>} : memref<2x3xf32, #tpu.memory_space<vmem>>, vector<2x3xf32>,
    return
  }
  func.func @transform_0(%arg0: i32) -> (i32, i32) {
    %c0_i32 = arith.constant 0 : i32
    %c0_i32_0 = arith.constant 0 : i32
    return %arg0, %c0_i32 : i32, i32
  }
  func.func @transform_1(%arg0: i32) -> (i32, i32, i32) {
    %c0_i32 = arith.constant 0 : i32
    %c0_i32_0 = arith.constant 0 : i32
    %c0_i32_1 = arith.constant 0 : i32
    %c0_i32_2 = arith.constant 0 : i32
    return %c0_i32, %c0_i32_0, %c0_i32_1 : i32, i32, i32
  }
  func.func @transform_2(%arg0: i32) -> (i32, i32) {
    %c0_i32 = arith.constant 0 : i32
    %c0_i32_0 = arith.constant 0 : i32
    %c0_i32_1 = arith.constant 0 : i32
    return %c0_i32, %c0_i32_0 : i32, i32
  }
  func.func @transform_3(%arg0: i32) -> (i32, i32) {
    %c0_i32 = arith.constant 0 : i32
    %c0_i32_0 = arith.constant 0 : i32
    %c0_i32_1 = arith.constant 0 : i32
    return %c0_i32, %c0_i32_0 : i32, i32
  }
  func.func @transform_4(%arg0: i32) -> (i32, i32) {
    %c0_i32 = arith.constant 0 : i32
    %c0_i32_0 = arith.constant 0 : i32
    %c0_i32_1 = arith.constant 0 : i32
    return %c0_i32, %c0_i32_0 : i32, i32
  }
  func.func @transform_5(%arg0: i32) -> (i32, i32, i32) {
    %c0_i32 = arith.constant 0 : i32
    %c0_i32_0 = arith.constant 0 : i32
    %c0_i32_1 = arith.constant 0 : i32
    %c0_i32_2 = arith.constant 0 : i32
    return %c0_i32, %c0_i32_0, %c0_i32_1 : i32, i32, i32
  }
  func.func @transform_6(%arg0: i32) -> (i32, i32) {
    %c0_i32 = arith.constant 0 : i32
    %c0_i32_0 = arith.constant 0 : i32
    %c0_i32_1 = arith.constant 0 : i32
    return %c0_i32, %c0_i32_0 : i32, i32
  }
  func.func @transform_7(%arg0: i32) -> (i32, i32) {
    %c0_i32 = arith.constant 0 : i32
    %c0_i32_0 = arith.constant 0 : i32
    return %arg0, %c0_i32 : i32, i32
  }
}

</mosaic_0001>

<llo_original>
// kernel: tpu_custom_call.1
$region0: #{tpu_custom_call.1}
  #allocation0 [shape = 'u32[]', space=smem, size = 0x4, offset = 0x4, fixed_abs, tag = 'smem constant byte address 0x4 - core index']
  #allocation1 [shape = 'u32[72,128]{1,0:T(1,128)}', space=vmem, size = 0x9000, scoped, tag = 'internal scratch']
  %s0 = inlined_call_operand.vmem [shape: f32[208,4], index: 0, kind: input, shape index: {}]
  %s1 = inlined_call_operand.vmem [shape: f32[9,4,32], index: 1, kind: input, shape index: {}]
  %s2 = inlined_call_operand.vmem [shape: f32[1,32], index: 2, kind: input, shape index: {}]
  %s3 = inlined_call_operand.vmem [shape: f32[32,2], index: 3, kind: input, shape index: {}]
  %s4 = inlined_call_operand.vmem [shape: f32[1,2], index: 4, kind: input, shape index: {}]
  %s5 = inlined_call_operand.vmem [shape: f32[2,184,3], index: 5, kind: input, shape index: {}]
  %s6 = inlined_call_operand.vmem [shape: f32[1,3], index: 6, kind: input, shape index: {}]
  %s7 = inlined_call_operand.hbm [shape: f32[2,3], index: 7, kind: output, shape index: {}]
  %s8 = sld [smem:[#allocation0]]
  $region38: #{tpu_custom_call.1} parent=0
    _
  %s10 = ssub.s32 1, %s8
  %s11 = scalar_select 0, %s10, %s8
  $region1: #{tpu_custom_call.1} parent=0
    #allocation2 [shape = 'u8[1024]{0}', space=vmem, size = 0x400, scoped, tag = 'output window, operand 0, single buffered']
    #allocation3 [shape = 's32[1]{0}', space=sflag, size = 0x4, scoped, tag = 'scoped memory for tpu_custom_call.1']
    %12 = vsyncpa [#allocation3], 0
    // Predicated region
    $region2: #{tpu_custom_call.1} parent=1 // pred_check
      _
    $region3: #{tpu_custom_call.1} parent=1 // pred_check_branch
      %14 = sbr.rel (0) target = $region5
    $region4: #{tpu_custom_call.1} parent=1 // pred_region
      _
    $region5: #{tpu_custom_call.1} parent=1 // pred_fallthru
      _
    // Predicated region
    $region6: #{tpu_custom_call.1} parent=1 // pred_check
      _
    $region7: #{tpu_custom_call.1} parent=1 // pred_check_branch
      %16 = sbr.rel (0) target = $region9
    $region8: #{tpu_custom_call.1} parent=1 // pred_region
      _
    $region9: #{tpu_custom_call.1} parent=1 // pred_fallthru
      _
    // Predicated region
    $region10: #{tpu_custom_call.1} parent=1 // pred_check
      _
    $region11: #{tpu_custom_call.1} parent=1 // pred_check_branch
      %18 = sbr.rel (0) target = $region13
    $region12: #{tpu_custom_call.1} parent=1 // pred_region
      _
    $region13: #{tpu_custom_call.1} parent=1 // pred_fallthru
      _
    // Predicated region
    $region14: #{tpu_custom_call.1} parent=1 // pred_check
      _
    $region15: #{tpu_custom_call.1} parent=1 // pred_check_branch
      %20 = sbr.rel (0) target = $region17
    $region16: #{tpu_custom_call.1} parent=1 // pred_region
      _
    $region17: #{tpu_custom_call.1} parent=1 // pred_fallthru
      _
    // Predicated region
    $region18: #{tpu_custom_call.1} parent=1 // pred_check
      _
    $region19: #{tpu_custom_call.1} parent=1 // pred_check_branch
      %22 = sbr.rel (0) target = $region21
    $region20: #{tpu_custom_call.1} parent=1 // pred_region
      _
    $region21: #{tpu_custom_call.1} parent=1 // pred_fallthru
      _
    // Predicated region
    $region22: #{tpu_custom_call.1} parent=1 // pred_check
      _
    $region23: #{tpu_custom_call.1} parent=1 // pred_check_branch
      %24 = sbr.rel (0) target = $region25
    $region24: #{tpu_custom_call.1} parent=1 // pred_region
      _
    $region25: #{tpu_custom_call.1} parent=1 // pred_fallthru
      _
    // Predicated region
    $region26: #{tpu_custom_call.1} parent=1 // pred_check
      _
    $region27: #{tpu_custom_call.1} parent=1 // pred_check_branch
      %26 = sbr.rel (0) target = $region29
    $region28: #{tpu_custom_call.1} parent=1 // pred_region
      _
    $region29: #{tpu_custom_call.1} parent=1 // pred_fallthru
      _
    %v27 = vld [vmem:[%s0] sm:$0xff]
    %v28 = vld [vmem:[%s0 + $0x8] sm:$0xff]
    %v29 = vld [vmem:[%s0 + $0x10] sm:$0xff]
    %v30 = vld [vmem:[%s0 + $0x18] sm:$0xff]
    %v31 = vld [vmem:[%s0 + $0x20] sm:$0xff]
    %v32 = vld [vmem:[%s0 + $0x28] sm:$0xff]
    %v33 = vld [vmem:[%s0 + $0x30] sm:$0xff]
    %v34 = vld [vmem:[%s0 + $0x38] sm:$0xff]
    %v35 = vld [vmem:[%s0 + $0x40] sm:$0xff]
    %v36 = vld [vmem:[%s0 + $0x48] sm:$0xff]
    %v37 = vld [vmem:[%s0 + $0x50] sm:$0xff]
    %v38 = vld [vmem:[%s0 + $0x58] sm:$0xff]
    %v39 = vld [vmem:[%s0 + $0x60] sm:$0xff]
    %v40 = vld [vmem:[%s0 + $0x68] sm:$0xff]
    %v41 = vld [vmem:[%s0 + $0x70] sm:$0xff]
    %v42 = vld [vmem:[%s0 + $0x78] sm:$0xff]
    %v43 = vld [vmem:[%s0 + $0x80] sm:$0xff]
    %v44 = vld [vmem:[%s0 + $0x88] sm:$0xff]
    %v45 = vld [vmem:[%s0 + $0x90] sm:$0xff]
    %v46 = vld [vmem:[%s0 + $0x98] sm:$0xff]
    %v47 = vld [vmem:[%s0 + $0xa0] sm:$0xff]
    %v48 = vld [vmem:[%s0 + $0xa8] sm:$0xff]
    %v49 = vld [vmem:[%s0 + $0xb0] sm:$0xff]
    %v50 = vld [vmem:[%s1] sm:$0xf]
    %v51 = vld [vmem:[%s0 + $0x1] sm:$0xff]
    %v52 = vld [vmem:[%s0 + $0x9] sm:$0xff]
    %v53 = vld [vmem:[%s0 + $0x11] sm:$0xff]
    %v54 = vld [vmem:[%s0 + $0x19] sm:$0xff]
    %v55 = vld [vmem:[%s0 + $0x21] sm:$0xff]
    %v56 = vld [vmem:[%s0 + $0x29] sm:$0xff]
    %v57 = vld [vmem:[%s0 + $0x31] sm:$0xff]
    %v58 = vld [vmem:[%s0 + $0x39] sm:$0xff]
    %v59 = vld [vmem:[%s0 + $0x41] sm:$0xff]
    %v60 = vld [vmem:[%s0 + $0x49] sm:$0xff]
    %v61 = vld [vmem:[%s0 + $0x51] sm:$0xff]
    %v62 = vld [vmem:[%s0 + $0x59] sm:$0xff]
    %v63 = vld [vmem:[%s0 + $0x61] sm:$0xff]
    %v64 = vld [vmem:[%s0 + $0x69] sm:$0xff]
    %v65 = vld [vmem:[%s0 + $0x71] sm:$0xff]
    %v66 = vld [vmem:[%s0 + $0x79] sm:$0xff]
    %v67 = vld [vmem:[%s0 + $0x81] sm:$0xff]
    %v68 = vld [vmem:[%s0 + $0x89] sm:$0xff]
    %v69 = vld [vmem:[%s0 + $0x91] sm:$0xff]
    %v70 = vld [vmem:[%s0 + $0x99] sm:$0xff]
    %v71 = vld [vmem:[%s0 + $0xa1] sm:$0xff]
    %v72 = vld [vmem:[%s0 + $0xa9] sm:$0xff]
    %v73 = vld [vmem:[%s0 + $0xb1] sm:$0xff]
    %s74 = scalar_lea.vmem %s1, 4
    %v75 = vld [vmem:[%s74] sm:$0xf]
    %vm76 = vcmask 31744
    %v78 = vsel %vm76, %v51, 0
    %v81 = vsel %vm76, %v52, 0
    %v84 = vsel %vm76, %v53, 0
    %v87 = vsel %vm76, %v54, 0
    %v90 = vsel %vm76, %v55, 0
    %v93 = vsel %vm76, %v56, 0
    %v96 = vsel %vm76, %v57, 0
    %v99 = vsel %vm76, %v58, 0
    %v102 = vsel %vm76, %v59, 0
    %v105 = vsel %vm76, %v60, 0
    %v108 = vsel %vm76, %v61, 0
    %v111 = vsel %vm76, %v62, 0
    %v114 = vsel %vm76, %v63, 0
    %v117 = vsel %vm76, %v64, 0
    %v120 = vsel %vm76, %v65, 0
    %v123 = vsel %vm76, %v66, 0
    %v126 = vsel %vm76, %v67, 0
    %v129 = vsel %vm76, %v68, 0
    %v132 = vsel %vm76, %v69, 0
    %v135 = vsel %vm76, %v70, 0
    %v138 = vsel %vm76, %v71, 0
    %v141 = vsel %vm76, %v72, 0
    %v144 = vsel %vm76, %v73, 0
    %vm146 = vcmask 1043456
    %v148 = vsel %vm146, %v75, 0
    %150 = vmatpush.msra.mxu0 0.0
    %151 = vmatpush.msra.mxu0 0.0
    %152 = vmatpush.msra.mxu0 0.0
    %153 = vmatpush.msra.mxu0 0.0
    %154 = vmatpush.msra.mxu0 0.0
    %155 = vmatpush.msra.mxu0 0.0
    %156 = vmatpush.msra.mxu0 0.0
    %157 = vmatpush.msra.mxu0 0.0
    %158 = vmatpush.msra.mxu0 0.0
    %159 = vmatpush.msra.mxu0 0.0
    %160 = vmatpush.msra.mxu0 0.0
    %161 = vmatpush.msra.mxu0 0.0
    %162 = vmatpush.msra.mxu0 0.0
    %163 = vmatpush.msra.mxu0 0.0
    %164 = vmatpush.msra.mxu0 0.0
    %165 = vmatpush.msra.mxu0 %v148
    %166 = vmatmul.f32.gmra.mxu0 %v78
    %v167 = vpop.f32.mrf.mxu0
    %v168 = vadd.f32 0.0, %v167
    %169 = vmatmul.f32.gmra.mxu0 %v81
    %v170 = vpop.f32.mrf.mxu0
    %v171 = vadd.f32 0.0, %v170
    %172 = vmatmul.f32.gmra.mxu0 %v84
    %v173 = vpop.f32.mrf.mxu0
    %v174 = vadd.f32 0.0, %v173
    %175 = vmatmul.f32.gmra.mxu0 %v87
    %v176 = vpop.f32.mrf.mxu0
    %v177 = vadd.f32 0.0, %v176
    %178 = vmatmul.f32.gmra.mxu0 %v90
    %v179 = vpop.f32.mrf.mxu0
    %v180 = vadd.f32 0.0, %v179
    %181 = vmatmul.f32.gmra.mxu0 %v93
    %v182 = vpop.f32.mrf.mxu0
    %v183 = vadd.f32 0.0, %v182
    %184 = vmatmul.f32.gmra.mxu0 %v96
    %v185 = vpop.f32.mrf.mxu0
    %v186 = vadd.f32 0.0, %v185
    %187 = vmatmul.f32.gmra.mxu0 %v99
    %v188 = vpop.f32.mrf.mxu0
    %v189 = vadd.f32 0.0, %v188
    %190 = vmatmul.f32.gmra.mxu0 %v102
    %v191 = vpop.f32.mrf.mxu0
    %v192 = vadd.f32 0.0, %v191
    %193 = vmatmul.f32.gmra.mxu0 %v105
    %v194 = vpop.f32.mrf.mxu0
    %v195 = vadd.f32 0.0, %v194
    %196 = vmatmul.f32.gmra.mxu0 %v108
    %v197 = vpop.f32.mrf.mxu0
    %v198 = vadd.f32 0.0, %v197
    %199 = vmatmul.f32.gmra.mxu0 %v111
    %v200 = vpop.f32.mrf.mxu0
    %v201 = vadd.f32 0.0, %v200
    %202 = vmatmul.f32.gmra.mxu0 %v114
    %v203 = vpop.f32.mrf.mxu0
    %v204 = vadd.f32 0.0, %v203
    %205 = vmatmul.f32.gmra.mxu0 %v117
    %v206 = vpop.f32.mrf.mxu0
    %v207 = vadd.f32 0.0, %v206
    %208 = vmatmul.f32.gmra.mxu0 %v120
    %v209 = vpop.f32.mrf.mxu0
    %v210 = vadd.f32 0.0, %v209
    %211 = vmatmul.f32.gmra.mxu0 %v123
    %v212 = vpop.f32.mrf.mxu0
    %v213 = vadd.f32 0.0, %v212
    %214 = vmatmul.f32.gmra.mxu0 %v126
    %v215 = vpop.f32.mrf.mxu0
    %v216 = vadd.f32 0.0, %v215
    %217 = vmatmul.f32.gmra.mxu0 %v129
    %v218 = vpop.f32.mrf.mxu0
    %v219 = vadd.f32 0.0, %v218
    %220 = vmatmul.f32.gmra.mxu0 %v132
    %v221 = vpop.f32.mrf.mxu0
    %v222 = vadd.f32 0.0, %v221
    %223 = vmatmul.f32.gmra.mxu0 %v135
    %v224 = vpop.f32.mrf.mxu0
    %v225 = vadd.f32 0.0, %v224
    %226 = vmatmul.f32.gmra.mxu0 %v138
    %v227 = vpop.f32.mrf.mxu0
    %v228 = vadd.f32 0.0, %v227
    %229 = vmatmul.f32.gmra.mxu0 %v141
    %v230 = vpop.f32.mrf.mxu0
    %v231 = vadd.f32 0.0, %v230
    %232 = vmatmul.f32.gmra.mxu0 %v144
    %v233 = vpop.f32.mrf.mxu0
    %v234 = vadd.f32 0.0, %v233
    %235 = vdwg.mxu0
    %v237 = vsel %vm76, %v27, 0
    %v240 = vsel %vm76, %v28, 0
    %v243 = vsel %vm76, %v29, 0
    %v246 = vsel %vm76, %v30, 0
    %v249 = vsel %vm76, %v31, 0
    %v252 = vsel %vm76, %v32, 0
    %v255 = vsel %vm76, %v33, 0
    %v258 = vsel %vm76, %v34, 0
    %v261 = vsel %vm76, %v35, 0
    %v264 = vsel %vm76, %v36, 0
    %v267 = vsel %vm76, %v37, 0
    %v270 = vsel %vm76, %v38, 0
    %v273 = vsel %vm76, %v39, 0
    %v276 = vsel %vm76, %v40, 0
    %v279 = vsel %vm76, %v41, 0
    %v282 = vsel %vm76, %v42, 0
    %v285 = vsel %vm76, %v43, 0
    %v288 = vsel %vm76, %v44, 0
    %v291 = vsel %vm76, %v45, 0
    %v294 = vsel %vm76, %v46, 0
    %v297 = vsel %vm76, %v47, 0
    %v300 = vsel %vm76, %v48, 0
    %v303 = vsel %vm76, %v49, 0
    %v306 = vsel %vm146, %v50, 0
    %308 = vmatpush.msra.mxu0 0.0
    %309 = vmatpush.msra.mxu0 0.0
    %310 = vmatpush.msra.mxu0 0.0
    %311 = vmatpush.msra.mxu0 0.0
    %312 = vmatpush.msra.mxu0 0.0
    %313 = vmatpush.msra.mxu0 0.0
    %314 = vmatpush.msra.mxu0 0.0
    %315 = vmatpush.msra.mxu0 0.0
    %316 = vmatpush.msra.mxu0 0.0
    %317 = vmatpush.msra.mxu0 0.0
    %318 = vmatpush.msra.mxu0 0.0
    %319 = vmatpush.msra.mxu0 0.0
    %320 = vmatpush.msra.mxu0 0.0
    %321 = vmatpush.msra.mxu0 0.0
    %322 = vmatpush.msra.mxu0 0.0
    %323 = vmatpush.msra.mxu0 %v306
    %324 = vmatmul.f32.gmra.mxu0 %v237
    %v325 = vpop.f32.mrf.mxu0
    %v326 = vadd.f32 %v168, %v325
    %327 = vmatmul.f32.gmra.mxu0 %v240
    %v328 = vpop.f32.mrf.mxu0
    %v329 = vadd.f32 %v171, %v328
    %330 = vmatmul.f32.gmra.mxu0 %v243
    %v331 = vpop.f32.mrf.mxu0
    %v332 = vadd.f32 %v174, %v331
    %333 = vmatmul.f32.gmra.mxu0 %v246
    %v334 = vpop.f32.mrf.mxu0
    %v335 = vadd.f32 %v177, %v334
    %336 = vmatmul.f32.gmra.mxu0 %v249
    %v337 = vpop.f32.mrf.mxu0
    %v338 = vadd.f32 %v180, %v337
    %339 = vmatmul.f32.gmra.mxu0 %v252
    %v340 = vpop.f32.mrf.mxu0
    %v341 = vadd.f32 %v183, %v340
    %342 = vmatmul.f32.gmra.mxu0 %v255
    %v343 = vpop.f32.mrf.mxu0
    %v344 = vadd.f32 %v186, %v343
    %345 = vmatmul.f32.gmra.mxu0 %v258
    %v346 = vpop.f32.mrf.mxu0
    %v347 = vadd.f32 %v189, %v346
    %348 = vmatmul.f32.gmra.mxu0 %v261
    %v349 = vpop.f32.mrf.mxu0
    %v350 = vadd.f32 %v192, %v349
    %351 = vmatmul.f32.gmra.mxu0 %v264
    %v352 = vpop.f32.mrf.mxu0
    %v353 = vadd.f32 %v195, %v352
    %354 = vmatmul.f32.gmra.mxu0 %v267
    %v355 = vpop.f32.mrf.mxu0
    %v356 = vadd.f32 %v198, %v355
    %357 = vmatmul.f32.gmra.mxu0 %v270
    %v358 = vpop.f32.mrf.mxu0
    %v359 = vadd.f32 %v201, %v358
    %360 = vmatmul.f32.gmra.mxu0 %v273
    %v361 = vpop.f32.mrf.mxu0
    %v362 = vadd.f32 %v204, %v361
    %363 = vmatmul.f32.gmra.mxu0 %v276
    %v364 = vpop.f32.mrf.mxu0
    %v365 = vadd.f32 %v207, %v364
    %366 = vmatmul.f32.gmra.mxu0 %v279
    %v367 = vpop.f32.mrf.mxu0
    %v368 = vadd.f32 %v210, %v367
    %369 = vmatmul.f32.gmra.mxu0 %v282
    %v370 = vpop.f32.mrf.mxu0
    %v371 = vadd.f32 %v213, %v370
    %372 = vmatmul.f32.gmra.mxu0 %v285
    %v373 = vpop.f32.mrf.mxu0
    %v374 = vadd.f32 %v216, %v373
    %375 = vmatmul.f32.gmra.mxu0 %v288
    %v376 = vpop.f32.mrf.mxu0
    %v377 = vadd.f32 %v219, %v376
    %378 = vmatmul.f32.gmra.mxu0 %v291
    %v379 = vpop.f32.mrf.mxu0
    %v380 = vadd.f32 %v222, %v379
    %381 = vmatmul.f32.gmra.mxu0 %v294
    %v382 = vpop.f32.mrf.mxu0
    %v383 = vadd.f32 %v225, %v382
    %384 = vmatmul.f32.gmra.mxu0 %v297
    %v385 = vpop.f32.mrf.mxu0
    %v386 = vadd.f32 %v228, %v385
    %387 = vmatmul.f32.gmra.mxu0 %v300
    %v388 = vpop.f32.mrf.mxu0
    %v389 = vadd.f32 %v231, %v388
    %390 = vmatmul.f32.gmra.mxu0 %v303
    %v391 = vpop.f32.mrf.mxu0
    %v392 = vadd.f32 %v234, %v391
    %393 = vdwg.mxu0
    %v394 = vld [vmem:[%s0 + $0x2] sm:$0xff]
    %v395 = vld [vmem:[%s0 + $0xa] sm:$0xff]
    %v396 = vld [vmem:[%s0 + $0x12] sm:$0xff]
    %v397 = vld [vmem:[%s0 + $0x1a] sm:$0xff]
    %v398 = vld [vmem:[%s0 + $0x22] sm:$0xff]
    %v399 = vld [vmem:[%s0 + $0x2a] sm:$0xff]
    %v400 = vld [vmem:[%s0 + $0x32] sm:$0xff]
    %v401 = vld [vmem:[%s0 + $0x3a] sm:$0xff]
    %v402 = vld [vmem:[%s0 + $0x42] sm:$0xff]
    %v403 = vld [vmem:[%s0 + $0x4a] sm:$0xff]
    %v404 = vld [vmem:[%s0 + $0x52] sm:$0xff]
    %v405 = vld [vmem:[%s0 + $0x5a] sm:$0xff]
    %v406 = vld [vmem:[%s0 + $0x62] sm:$0xff]
    %v407 = vld [vmem:[%s0 + $0x6a] sm:$0xff]
    %v408 = vld [vmem:[%s0 + $0x72] sm:$0xff]
    %v409 = vld [vmem:[%s0 + $0x7a] sm:$0xff]
    %v410 = vld [vmem:[%s0 + $0x82] sm:$0xff]
    %v411 = vld [vmem:[%s0 + $0x8a] sm:$0xff]
    %v412 = vld [vmem:[%s0 + $0x92] sm:$0xff]
    %v413 = vld [vmem:[%s0 + $0x9a] sm:$0xff]
    %v414 = vld [vmem:[%s0 + $0xa2] sm:$0xff]
    %v415 = vld [vmem:[%s0 + $0xaa] sm:$0xff]
    %v416 = vld [vmem:[%s0 + $0xb2] sm:$0xff]
    %s417 = scalar_lea.vmem %s1, 8
    %v418 = vld [vmem:[%s417] sm:$0xf]
    %v420 = vsel %vm76, %v394, 0
    %v423 = vsel %vm76, %v395, 0
    %v426 = vsel %vm76, %v396, 0
    %v429 = vsel %vm76, %v397, 0
    %v432 = vsel %vm76, %v398, 0
    %v435 = vsel %vm76, %v399, 0
    %v438 = vsel %vm76, %v400, 0
    %v441 = vsel %vm76, %v401, 0
    %v444 = vsel %vm76, %v402, 0
    %v447 = vsel %vm76, %v403, 0
    %v450 = vsel %vm76, %v404, 0
    %v453 = vsel %vm76, %v405, 0
    %v456 = vsel %vm76, %v406, 0
    %v459 = vsel %vm76, %v407, 0
    %v462 = vsel %vm76, %v408, 0
    %v465 = vsel %vm76, %v409, 0
    %v468 = vsel %vm76, %v410, 0
    %v471 = vsel %vm76, %v411, 0
    %v474 = vsel %vm76, %v412, 0
    %v477 = vsel %vm76, %v413, 0
    %v480 = vsel %vm76, %v414, 0
    %v483 = vsel %vm76, %v415, 0
    %v486 = vsel %vm76, %v416, 0
    %v489 = vsel %vm146, %v418, 0
    %491 = vmatpush.msra.mxu0 0.0
    %492 = vmatpush.msra.mxu0 0.0
    %493 = vmatpush.msra.mxu0 0.0
    %494 = vmatpush.msra.mxu0 0.0
    %495 = vmatpush.msra.mxu0 0.0
    %496 = vmatpush.msra.mxu0 0.0
    %497 = vmatpush.msra.mxu0 0.0
    %498 = vmatpush.msra.mxu0 0.0
    %499 = vmatpush.msra.mxu0 0.0
    %500 = vmatpush.msra.mxu0 0.0
    %501 = vmatpush.msra.mxu0 0.0
    %502 = vmatpush.msra.mxu0 0.0
    %503 = vmatpush.msra.mxu0 0.0
    %504 = vmatpush.msra.mxu0 0.0
    %505 = vmatpush.msra.mxu0 0.0
    %506 = vmatpush.msra.mxu0 %v489
    %507 = vmatmul.f32.gmra.mxu0 %v420
    %v508 = vpop.f32.mrf.mxu0
    %v509 = vadd.f32 0.0, %v508
    %510 = vmatmul.f32.gmra.mxu0 %v423
    %v511 = vpop.f32.mrf.mxu0
    %v512 = vadd.f32 0.0, %v511
    %513 = vmatmul.f32.gmra.mxu0 %v426
    %v514 = vpop.f32.mrf.mxu0
    %v515 = vadd.f32 0.0, %v514
    %516 = vmatmul.f32.gmra.mxu0 %v429
    %v517 = vpop.f32.mrf.mxu0
    %v518 = vadd.f32 0.0, %v517
    %519 = vmatmul.f32.gmra.mxu0 %v432
    %v520 = vpop.f32.mrf.mxu0
    %v521 = vadd.f32 0.0, %v520
    %522 = vmatmul.f32.gmra.mxu0 %v435
    %v523 = vpop.f32.mrf.mxu0
    %v524 = vadd.f32 0.0, %v523
    %525 = vmatmul.f32.gmra.mxu0 %v438
    %v526 = vpop.f32.mrf.mxu0
    %v527 = vadd.f32 0.0, %v526
    %528 = vmatmul.f32.gmra.mxu0 %v441
    %v529 = vpop.f32.mrf.mxu0
    %v530 = vadd.f32 0.0, %v529
    %531 = vmatmul.f32.gmra.mxu0 %v444
    %v532 = vpop.f32.mrf.mxu0
    %v533 = vadd.f32 0.0, %v532
    %534 = vmatmul.f32.gmra.mxu0 %v447
    %v535 = vpop.f32.mrf.mxu0
    %v536 = vadd.f32 0.0, %v535
    %537 = vmatmul.f32.gmra.mxu0 %v450
    %v538 = vpop.f32.mrf.mxu0
    %v539 = vadd.f32 0.0, %v538
    %540 = vmatmul.f32.gmra.mxu0 %v453
    %v541 = vpop.f32.mrf.mxu0
    %v542 = vadd.f32 0.0, %v541
    %543 = vmatmul.f32.gmra.mxu0 %v456
    %v544 = vpop.f32.mrf.mxu0
    %v545 = vadd.f32 0.0, %v544
    %546 = vmatmul.f32.gmra.mxu0 %v459
    %v547 = vpop.f32.mrf.mxu0
    %v548 = vadd.f32 0.0, %v547
    %549 = vmatmul.f32.gmra.mxu0 %v462
    %v550 = vpop.f32.mrf.mxu0
    %v551 = vadd.f32 0.0, %v550
    %552 = vmatmul.f32.gmra.mxu0 %v465
    %v553 = vpop.f32.mrf.mxu0
    %v554 = vadd.f32 0.0, %v553
    %555 = vmatmul.f32.gmra.mxu0 %v468
    %v556 = vpop.f32.mrf.mxu0
    %v557 = vadd.f32 0.0, %v556
    %558 = vmatmul.f32.gmra.mxu0 %v471
    %v559 = vpop.f32.mrf.mxu0
    %v560 = vadd.f32 0.0, %v559
    %561 = vmatmul.f32.gmra.mxu0 %v474
    %v562 = vpop.f32.mrf.mxu0
    %v563 = vadd.f32 0.0, %v562
    %564 = vmatmul.f32.gmra.mxu0 %v477
    %v565 = vpop.f32.mrf.mxu0
    %v566 = vadd.f32 0.0, %v565
    %567 = vmatmul.f32.gmra.mxu0 %v480
    %v568 = vpop.f32.mrf.mxu0
    %v569 = vadd.f32 0.0, %v568
    %570 = vmatmul.f32.gmra.mxu0 %v483
    %v571 = vpop.f32.mrf.mxu0
    %v572 = vadd.f32 0.0, %v571
    %573 = vmatmul.f32.gmra.mxu0 %v486
    %v574 = vpop.f32.mrf.mxu0
    %v575 = vadd.f32 0.0, %v574
    %576 = vdwg.mxu0
    %v577 = vadd.f32 %v326, %v509
    %v578 = vadd.f32 %v329, %v512
    %v579 = vadd.f32 %v332, %v515
    %v580 = vadd.f32 %v335, %v518
    %v581 = vadd.f32 %v338, %v521
    %v582 = vadd.f32 %v341, %v524
    %v583 = vadd.f32 %v344, %v527
    %v584 = vadd.f32 %v347, %v530
    %v585 = vadd.f32 %v350, %v533
    %v586 = vadd.f32 %v353, %v536
    %v587 = vadd.f32 %v356, %v539
    %v588 = vadd.f32 %v359, %v542
    %v589 = vadd.f32 %v362, %v545
    %v590 = vadd.f32 %v365, %v548
    %v591 = vadd.f32 %v368, %v551
    %v592 = vadd.f32 %v371, %v554
    %v593 = vadd.f32 %v374, %v557
    %v594 = vadd.f32 %v377, %v560
    %v595 = vadd.f32 %v380, %v563
    %v596 = vadd.f32 %v383, %v566
    %v597 = vadd.f32 %v386, %v569
    %v598 = vadd.f32 %v389, %v572
    %v599 = vadd.f32 %v392, %v575
    %v600 = vld [vmem:[%s0 + $0xa] sm:$0xff]
    %v601 = vld [vmem:[%s0 + $0x12] sm:$0xff]
    %v602 = vld [vmem:[%s0 + $0x1a] sm:$0xff]
    %v603 = vld [vmem:[%s0 + $0x22] sm:$0xff]
    %v604 = vld [vmem:[%s0 + $0x2a] sm:$0xff]
    %v605 = vld [vmem:[%s0 + $0x32] sm:$0xff]
    %v606 = vld [vmem:[%s0 + $0x3a] sm:$0xff]
    %v607 = vld [vmem:[%s0 + $0x42] sm:$0xff]
    %v608 = vld [vmem:[%s0 + $0x4a] sm:$0xff]
    %v609 = vld [vmem:[%s0 + $0x52] sm:$0xff]
    %v610 = vld [vmem:[%s0 + $0x5a] sm:$0xff]
    %v611 = vld [vmem:[%s0 + $0x62] sm:$0xff]
    %v612 = vld [vmem:[%s0 + $0x6a] sm:$0xff]
    %v613 = vld [vmem:[%s0 + $0x72] sm:$0xff]
    %v614 = vld [vmem:[%s0 + $0x7a] sm:$0xff]
    %v615 = vld [vmem:[%s0 + $0x82] sm:$0xff]
    %v616 = vld [vmem:[%s0 + $0x8a] sm:$0xff]
    %v617 = vld [vmem:[%s0 + $0x92] sm:$0xff]
    %v618 = vld [vmem:[%s0 + $0x9a] sm:$0xff]
    %v619 = vld [vmem:[%s0 + $0xa2] sm:$0xff]
    %v620 = vld [vmem:[%s0 + $0xaa] sm:$0xff]
    %v621 = vld [vmem:[%s0 + $0xb2] sm:$0xff]
    %v622 = vld [vmem:[%s0 + $0xba] sm:$0xff]
    %s623 = scalar_lea.vmem %s1, 12
    %v624 = vld [vmem:[%s623] sm:$0xf]
    %v626 = vsel %vm76, %v600, 0
    %v629 = vsel %vm76, %v601, 0
    %v632 = vsel %vm76, %v602, 0
    %v635 = vsel %vm76, %v603, 0
    %v638 = vsel %vm76, %v604, 0
    %v641 = vsel %vm76, %v605, 0
    %v644 = vsel %vm76, %v606, 0
    %v647 = vsel %vm76, %v607, 0
    %v650 = vsel %vm76, %v608, 0
    %v653 = vsel %vm76, %v609, 0
    %v656 = vsel %vm76, %v610, 0
    %v659 = vsel %vm76, %v611, 0
    %v662 = vsel %vm76, %v612, 0
    %v665 = vsel %vm76, %v613, 0
    %v668 = vsel %vm76, %v614, 0
    %v671 = vsel %vm76, %v615, 0
    %v674 = vsel %vm76, %v616, 0
    %v677 = vsel %vm76, %v617, 0
    %v680 = vsel %vm76, %v618, 0
    %v683 = vsel %vm76, %v619, 0
    %v686 = vsel %vm76, %v620, 0
    %v689 = vsel %vm76, %v621, 0
    %v692 = vsel %vm76, %v622, 0
    %v695 = vsel %vm146, %v624, 0
    %697 = vmatpush.msra.mxu0 0.0
    %698 = vmatpush.msra.mxu0 0.0
    %699 = vmatpush.msra.mxu0 0.0
    %700 = vmatpush.msra.mxu0 0.0
    %701 = vmatpush.msra.mxu0 0.0
    %702 = vmatpush.msra.mxu0 0.0
    %703 = vmatpush.msra.mxu0 0.0
    %704 = vmatpush.msra.mxu0 0.0
    %705 = vmatpush.msra.mxu0 0.0
    %706 = vmatpush.msra.mxu0 0.0
    %707 = vmatpush.msra.mxu0 0.0
    %708 = vmatpush.msra.mxu0 0.0
    %709 = vmatpush.msra.mxu0 0.0
    %710 = vmatpush.msra.mxu0 0.0
    %711 = vmatpush.msra.mxu0 0.0
    %712 = vmatpush.msra.mxu0 %v695
    %713 = vmatmul.f32.gmra.mxu0 %v626
    %v714 = vpop.f32.mrf.mxu0
    %v715 = vadd.f32 0.0, %v714
    %716 = vmatmul.f32.gmra.mxu0 %v629
    %v717 = vpop.f32.mrf.mxu0
    %v718 = vadd.f32 0.0, %v717
    %719 = vmatmul.f32.gmra.mxu0 %v632
    %v720 = vpop.f32.mrf.mxu0
    %v721 = vadd.f32 0.0, %v720
    %722 = vmatmul.f32.gmra.mxu0 %v635
    %v723 = vpop.f32.mrf.mxu0
    %v724 = vadd.f32 0.0, %v723
    %725 = vmatmul.f32.gmra.mxu0 %v638
    %v726 = vpop.f32.mrf.mxu0
    %v727 = vadd.f32 0.0, %v726
    %728 = vmatmul.f32.gmra.mxu0 %v641
    %v729 = vpop.f32.mrf.mxu0
    %v730 = vadd.f32 0.0, %v729
    %731 = vmatmul.f32.gmra.mxu0 %v644
    %v732 = vpop.f32.mrf.mxu0
    %v733 = vadd.f32 0.0, %v732
    %734 = vmatmul.f32.gmra.mxu0 %v647
    %v735 = vpop.f32.mrf.mxu0
    %v736 = vadd.f32 0.0, %v735
    %737 = vmatmul.f32.gmra.mxu0 %v650
    %v738 = vpop.f32.mrf.mxu0
    %v739 = vadd.f32 0.0, %v738
    %740 = vmatmul.f32.gmra.mxu0 %v653
    %v741 = vpop.f32.mrf.mxu0
    %v742 = vadd.f32 0.0, %v741
    %743 = vmatmul.f32.gmra.mxu0 %v656
    %v744 = vpop.f32.mrf.mxu0
    %v745 = vadd.f32 0.0, %v744
    %746 = vmatmul.f32.gmra.mxu0 %v659
    %v747 = vpop.f32.mrf.mxu0
    %v748 = vadd.f32 0.0, %v747
    %749 = vmatmul.f32.gmra.mxu0 %v662
    %v750 = vpop.f32.mrf.mxu0
    %v751 = vadd.f32 0.0, %v750
    %752 = vmatmul.f32.gmra.mxu0 %v665
    %v753 = vpop.f32.mrf.mxu0
    %v754 = vadd.f32 0.0, %v753
    %755 = vmatmul.f32.gmra.mxu0 %v668
    %v756 = vpop.f32.mrf.mxu0
    %v757 = vadd.f32 0.0, %v756
    %758 = vmatmul.f32.gmra.mxu0 %v671
    %v759 = vpop.f32.mrf.mxu0
    %v760 = vadd.f32 0.0, %v759
    %761 = vmatmul.f32.gmra.mxu0 %v674
    %v762 = vpop.f32.mrf.mxu0
    %v763 = vadd.f32 0.0, %v762
    %764 = vmatmul.f32.gmra.mxu0 %v677
    %v765 = vpop.f32.mrf.mxu0
    %v766 = vadd.f32 0.0, %v765
    %767 = vmatmul.f32.gmra.mxu0 %v680
    %v768 = vpop.f32.mrf.mxu0
    %v769 = vadd.f32 0.0, %v768
    %770 = vmatmul.f32.gmra.mxu0 %v683
    %v771 = vpop.f32.mrf.mxu0
    %v772 = vadd.f32 0.0, %v771
    %773 = vmatmul.f32.gmra.mxu0 %v686
    %v774 = vpop.f32.mrf.mxu0
    %v775 = vadd.f32 0.0, %v774
    %776 = vmatmul.f32.gmra.mxu0 %v689
    %v777 = vpop.f32.mrf.mxu0
    %v778 = vadd.f32 0.0, %v777
    %779 = vmatmul.f32.gmra.mxu0 %v692
    %v780 = vpop.f32.mrf.mxu0
    %v781 = vadd.f32 0.0, %v780
    %782 = vdwg.mxu0
    %v783 = vadd.f32 %v577, %v715
    %v784 = vadd.f32 %v578, %v718
    %v785 = vadd.f32 %v579, %v721
    %v786 = vadd.f32 %v580, %v724
    %v787 = vadd.f32 %v581, %v727
    %v788 = vadd.f32 %v582, %v730
    %v789 = vadd.f32 %v583, %v733
    %v790 = vadd.f32 %v584, %v736
    %v791 = vadd.f32 %v585, %v739
    %v792 = vadd.f32 %v586, %v742
    %v793 = vadd.f32 %v587, %v745
    %v794 = vadd.f32 %v588, %v748
    %v795 = vadd.f32 %v589, %v751
    %v796 = vadd.f32 %v590, %v754
    %v797 = vadd.f32 %v591, %v757
    %v798 = vadd.f32 %v592, %v760
    %v799 = vadd.f32 %v593, %v763
    %v800 = vadd.f32 %v594, %v766
    %v801 = vadd.f32 %v595, %v769
    %v802 = vadd.f32 %v596, %v772
    %v803 = vadd.f32 %v597, %v775
    %v804 = vadd.f32 %v598, %v778
    %v805 = vadd.f32 %v599, %v781
    %v806 = vld [vmem:[%s0 + $0xb] sm:$0xff]
    %v807 = vld [vmem:[%s0 + $0x13] sm:$0xff]
    %v808 = vld [vmem:[%s0 + $0x1b] sm:$0xff]
    %v809 = vld [vmem:[%s0 + $0x23] sm:$0xff]
    %v810 = vld [vmem:[%s0 + $0x2b] sm:$0xff]
    %v811 = vld [vmem:[%s0 + $0x33] sm:$0xff]
    %v812 = vld [vmem:[%s0 + $0x3b] sm:$0xff]
    %v813 = vld [vmem:[%s0 + $0x43] sm:$0xff]
    %v814 = vld [vmem:[%s0 + $0x4b] sm:$0xff]
    %v815 = vld [vmem:[%s0 + $0x53] sm:$0xff]
    %v816 = vld [vmem:[%s0 + $0x5b] sm:$0xff]
    %v817 = vld [vmem:[%s0 + $0x63] sm:$0xff]
    %v818 = vld [vmem:[%s0 + $0x6b] sm:$0xff]
    %v819 = vld [vmem:[%s0 + $0x73] sm:$0xff]
    %v820 = vld [vmem:[%s0 + $0x7b] sm:$0xff]
    %v821 = vld [vmem:[%s0 + $0x83] sm:$0xff]
    %v822 = vld [vmem:[%s0 + $0x8b] sm:$0xff]
    %v823 = vld [vmem:[%s0 + $0x93] sm:$0xff]
    %v824 = vld [vmem:[%s0 + $0x9b] sm:$0xff]
    %v825 = vld [vmem:[%s0 + $0xa3] sm:$0xff]
    %v826 = vld [vmem:[%s0 + $0xab] sm:$0xff]
    %v827 = vld [vmem:[%s0 + $0xb3] sm:$0xff]
    %v828 = vld [vmem:[%s0 + $0xbb] sm:$0xff]
    %s829 = scalar_lea.vmem %s1, 16
    %v830 = vld [vmem:[%s829] sm:$0xf]
    %v832 = vsel %vm76, %v806, 0
    %v835 = vsel %vm76, %v807, 0
    %v838 = vsel %vm76, %v808, 0
    %v841 = vsel %vm76, %v809, 0
    %v844 = vsel %vm76, %v810, 0
    %v847 = vsel %vm76, %v811, 0
    %v850 = vsel %vm76, %v812, 0
    %v853 = vsel %vm76, %v813, 0
    %v856 = vsel %vm76, %v814, 0
    %v859 = vsel %vm76, %v815, 0
    %v862 = vsel %vm76, %v816, 0
    %v865 = vsel %vm76, %v817, 0
    %v868 = vsel %vm76, %v818, 0
    %v871 = vsel %vm76, %v819, 0
    %v874 = vsel %vm76, %v820, 0
    %v877 = vsel %vm76, %v821, 0
    %v880 = vsel %vm76, %v822, 0
    %v883 = vsel %vm76, %v823, 0
    %v886 = vsel %vm76, %v824, 0
    %v889 = vsel %vm76, %v825, 0
    %v892 = vsel %vm76, %v826, 0
    %v895 = vsel %vm76, %v827, 0
    %v898 = vsel %vm76, %v828, 0
    %v901 = vsel %vm146, %v830, 0
    %903 = vmatpush.msra.mxu0 0.0
    %904 = vmatpush.msra.mxu0 0.0
    %905 = vmatpush.msra.mxu0 0.0
    %906 = vmatpush.msra.mxu0 0.0
    %907 = vmatpush.msra.mxu0 0.0
    %908 = vmatpush.msra.mxu0 0.0
    %909 = vmatpush.msra.mxu0 0.0
    %910 = vmatpush.msra.mxu0 0.0
    %911 = vmatpush.msra.mxu0 0.0
    %912 = vmatpush.msra.mxu0 0.0
    %913 = vmatpush.msra.mxu0 0.0
    %914 = vmatpush.msra.mxu0 0.0
    %915 = vmatpush.msra.mxu0 0.0
    %916 = vmatpush.msra.mxu0 0.0
    %917 = vmatpush.msra.mxu0 0.0
    %918 = vmatpush.msra.mxu0 %v901
    %919 = vmatmul.f32.gmra.mxu0 %v832
    %v920 = vpop.f32.mrf.mxu0
    %v921 = vadd.f32 0.0, %v920
    %922 = vmatmul.f32.gmra.mxu0 %v835
    %v923 = vpop.f32.mrf.mxu0
    %v924 = vadd.f32 0.0, %v923
    %925 = vmatmul.f32.gmra.mxu0 %v838
    %v926 = vpop.f32.mrf.mxu0
    %v927 = vadd.f32 0.0, %v926
    %928 = vmatmul.f32.gmra.mxu0 %v841
    %v929 = vpop.f32.mrf.mxu0
    %v930 = vadd.f32 0.0, %v929
    %931 = vmatmul.f32.gmra.mxu0 %v844
    %v932 = vpop.f32.mrf.mxu0
    %v933 = vadd.f32 0.0, %v932
    %934 = vmatmul.f32.gmra.mxu0 %v847
    %v935 = vpop.f32.mrf.mxu0
    %v936 = vadd.f32 0.0, %v935
    %937 = vmatmul.f32.gmra.mxu0 %v850
    %v938 = vpop.f32.mrf.mxu0
    %v939 = vadd.f32 0.0, %v938
    %940 = vmatmul.f32.gmra.mxu0 %v853
    %v941 = vpop.f32.mrf.mxu0
    %v942 = vadd.f32 0.0, %v941
    %943 = vmatmul.f32.gmra.mxu0 %v856
    %v944 = vpop.f32.mrf.mxu0
    %v945 = vadd.f32 0.0, %v944
    %946 = vmatmul.f32.gmra.mxu0 %v859
    %v947 = vpop.f32.mrf.mxu0
    %v948 = vadd.f32 0.0, %v947
    %949 = vmatmul.f32.gmra.mxu0 %v862
    %v950 = vpop.f32.mrf.mxu0
    %v951 = vadd.f32 0.0, %v950
    %952 = vmatmul.f32.gmra.mxu0 %v865
    %v953 = vpop.f32.mrf.mxu0
    %v954 = vadd.f32 0.0, %v953
    %955 = vmatmul.f32.gmra.mxu0 %v868
    %v956 = vpop.f32.mrf.mxu0
    %v957 = vadd.f32 0.0, %v956
    %958 = vmatmul.f32.gmra.mxu0 %v871
    %v959 = vpop.f32.mrf.mxu0
    %v960 = vadd.f32 0.0, %v959
    %961 = vmatmul.f32.gmra.mxu0 %v874
    %v962 = vpop.f32.mrf.mxu0
    %v963 = vadd.f32 0.0, %v962
    %964 = vmatmul.f32.gmra.mxu0 %v877
    %v965 = vpop.f32.mrf.mxu0
    %v966 = vadd.f32 0.0, %v965
    %967 = vmatmul.f32.gmra.mxu0 %v880
    %v968 = vpop.f32.mrf.mxu0
    %v969 = vadd.f32 0.0, %v968
    %970 = vmatmul.f32.gmra.mxu0 %v883
    %v971 = vpop.f32.mrf.mxu0
    %v972 = vadd.f32 0.0, %v971
    %973 = vmatmul.f32.gmra.mxu0 %v886
    %v974 = vpop.f32.mrf.mxu0
    %v975 = vadd.f32 0.0, %v974
    %976 = vmatmul.f32.gmra.mxu0 %v889
    %v977 = vpop.f32.mrf.mxu0
    %v978 = vadd.f32 0.0, %v977
    %979 = vmatmul.f32.gmra.mxu0 %v892
    %v980 = vpop.f32.mrf.mxu0
    %v981 = vadd.f32 0.0, %v980
    %982 = vmatmul.f32.gmra.mxu0 %v895
    %v983 = vpop.f32.mrf.mxu0
    %v984 = vadd.f32 0.0, %v983
    %985 = vmatmul.f32.gmra.mxu0 %v898
    %v986 = vpop.f32.mrf.mxu0
    %v987 = vadd.f32 0.0, %v986
    %988 = vdwg.mxu0
    %v989 = vadd.f32 %v783, %v921
    %v990 = vadd.f32 %v784, %v924
    %v991 = vadd.f32 %v785, %v927
    %v992 = vadd.f32 %v786, %v930
    %v993 = vadd.f32 %v787, %v933
    %v994 = vadd.f32 %v788, %v936
    %v995 = vadd.f32 %v789, %v939
    %v996 = vadd.f32 %v790, %v942
    %v997 = vadd.f32 %v791, %v945
    %v998 = vadd.f32 %v792, %v948
    %v999 = vadd.f32 %v793, %v951
    %v1000 = vadd.f32 %v794, %v954
    %v1001 = vadd.f32 %v795, %v957
    %v1002 = vadd.f32 %v796, %v960
    %v1003 = vadd.f32 %v797, %v963
    %v1004 = vadd.f32 %v798, %v966
    %v1005 = vadd.f32 %v799, %v969
    %v1006 = vadd.f32 %v800, %v972
    %v1007 = vadd.f32 %v801, %v975
    %v1008 = vadd.f32 %v802, %v978
    %v1009 = vadd.f32 %v803, %v981
    %v1010 = vadd.f32 %v804, %v984
    %v1011 = vadd.f32 %v805, %v987
    %v1012 = vld [vmem:[%s0 + $0xc] sm:$0xff]
    %v1013 = vld [vmem:[%s0 + $0x14] sm:$0xff]
    %v1014 = vld [vmem:[%s0 + $0x1c] sm:$0xff]
    %v1015 = vld [vmem:[%s0 + $0x24] sm:$0xff]
    %v1016 = vld [vmem:[%s0 + $0x2c] sm:$0xff]
    %v1017 = vld [vmem:[%s0 + $0x34] sm:$0xff]
    %v1018 = vld [vmem:[%s0 + $0x3c] sm:$0xff]
    %v1019 = vld [vmem:[%s0 + $0x44] sm:$0xff]
    %v1020 = vld [vmem:[%s0 + $0x4c] sm:$0xff]
    %v1021 = vld [vmem:[%s0 + $0x54] sm:$0xff]
    %v1022 = vld [vmem:[%s0 + $0x5c] sm:$0xff]
    %v1023 = vld [vmem:[%s0 + $0x64] sm:$0xff]
    %v1024 = vld [vmem:[%s0 + $0x6c] sm:$0xff]
    %v1025 = vld [vmem:[%s0 + $0x74] sm:$0xff]
    %v1026 = vld [vmem:[%s0 + $0x7c] sm:$0xff]
    %v1027 = vld [vmem:[%s0 + $0x84] sm:$0xff]
    %v1028 = vld [vmem:[%s0 + $0x8c] sm:$0xff]
    %v1029 = vld [vmem:[%s0 + $0x94] sm:$0xff]
    %v1030 = vld [vmem:[%s0 + $0x9c] sm:$0xff]
    %v1031 = vld [vmem:[%s0 + $0xa4] sm:$0xff]
    %v1032 = vld [vmem:[%s0 + $0xac] sm:$0xff]
    %v1033 = vld [vmem:[%s0 + $0xb4] sm:$0xff]
    %v1034 = vld [vmem:[%s0 + $0xbc] sm:$0xff]
    %s1035 = scalar_lea.vmem %s1, 20
    %v1036 = vld [vmem:[%s1035] sm:$0xf]
    %v1038 = vsel %vm76, %v1012, 0
    %v1041 = vsel %vm76, %v1013, 0
    %v1044 = vsel %vm76, %v1014, 0
    %v1047 = vsel %vm76, %v1015, 0
    %v1050 = vsel %vm76, %v1016, 0
    %v1053 = vsel %vm76, %v1017, 0
    %v1056 = vsel %vm76, %v1018, 0
    %v1059 = vsel %vm76, %v1019, 0
    %v1062 = vsel %vm76, %v1020, 0
    %v1065 = vsel %vm76, %v1021, 0
    %v1068 = vsel %vm76, %v1022, 0
    %v1071 = vsel %vm76, %v1023, 0
    %v1074 = vsel %vm76, %v1024, 0
    %v1077 = vsel %vm76, %v1025, 0
    %v1080 = vsel %vm76, %v1026, 0
    %v1083 = vsel %vm76, %v1027, 0
    %v1086 = vsel %vm76, %v1028, 0
    %v1089 = vsel %vm76, %v1029, 0
    %v1092 = vsel %vm76, %v1030, 0
    %v1095 = vsel %vm76, %v1031, 0
    %v1098 = vsel %vm76, %v1032, 0
    %v1101 = vsel %vm76, %v1033, 0
    %v1104 = vsel %vm76, %v1034, 0
    %v1107 = vsel %vm146, %v1036, 0
    %1109 = vmatpush.msra.mxu0 0.0
    %1110 = vmatpush.msra.mxu0 0.0
    %1111 = vmatpush.msra.mxu0 0.0
    %1112 = vmatpush.msra.mxu0 0.0
    %1113 = vmatpush.msra.mxu0 0.0
    %1114 = vmatpush.msra.mxu0 0.0
    %1115 = vmatpush.msra.mxu0 0.0
    %1116 = vmatpush.msra.mxu0 0.0
    %1117 = vmatpush.msra.mxu0 0.0
    %1118 = vmatpush.msra.mxu0 0.0
    %1119 = vmatpush.msra.mxu0 0.0
    %1120 = vmatpush.msra.mxu0 0.0
    %1121 = vmatpush.msra.mxu0 0.0
    %1122 = vmatpush.msra.mxu0 0.0
    %1123 = vmatpush.msra.mxu0 0.0
    %1124 = vmatpush.msra.mxu0 %v1107
    %1125 = vmatmul.f32.gmra.mxu0 %v1038
    %v1126 = vpop.f32.mrf.mxu0
    %v1127 = vadd.f32 0.0, %v1126
    %1128 = vmatmul.f32.gmra.mxu0 %v1041
    %v1129 = vpop.f32.mrf.mxu0
    %v1130 = vadd.f32 0.0, %v1129
    %1131 = vmatmul.f32.gmra.mxu0 %v1044
    %v1132 = vpop.f32.mrf.mxu0
    %v1133 = vadd.f32 0.0, %v1132
    %1134 = vmatmul.f32.gmra.mxu0 %v1047
    %v1135 = vpop.f32.mrf.mxu0
    %v1136 = vadd.f32 0.0, %v1135
    %1137 = vmatmul.f32.gmra.mxu0 %v1050
    %v1138 = vpop.f32.mrf.mxu0
    %v1139 = vadd.f32 0.0, %v1138
    %1140 = vmatmul.f32.gmra.mxu0 %v1053
    %v1141 = vpop.f32.mrf.mxu0
    %v1142 = vadd.f32 0.0, %v1141
    %1143 = vmatmul.f32.gmra.mxu0 %v1056
    %v1144 = vpop.f32.mrf.mxu0
    %v1145 = vadd.f32 0.0, %v1144
    %1146 = vmatmul.f32.gmra.mxu0 %v1059
    %v1147 = vpop.f32.mrf.mxu0
    %v1148 = vadd.f32 0.0, %v1147
    %1149 = vmatmul.f32.gmra.mxu0 %v1062
    %v1150 = vpop.f32.mrf.mxu0
    %v1151 = vadd.f32 0.0, %v1150
    %1152 = vmatmul.f32.gmra.mxu0 %v1065
    %v1153 = vpop.f32.mrf.mxu0
    %v1154 = vadd.f32 0.0, %v1153
    %1155 = vmatmul.f32.gmra.mxu0 %v1068
    %v1156 = vpop.f32.mrf.mxu0
    %v1157 = vadd.f32 0.0, %v1156
    %1158 = vmatmul.f32.gmra.mxu0 %v1071
    %v1159 = vpop.f32.mrf.mxu0
    %v1160 = vadd.f32 0.0, %v1159
    %1161 = vmatmul.f32.gmra.mxu0 %v1074
    %v1162 = vpop.f32.mrf.mxu0
    %v1163 = vadd.f32 0.0, %v1162
    %1164 = vmatmul.f32.gmra.mxu0 %v1077
    %v1165 = vpop.f32.mrf.mxu0
    %v1166 = vadd.f32 0.0, %v1165
    %1167 = vmatmul.f32.gmra.mxu0 %v1080
    %v1168 = vpop.f32.mrf.mxu0
    %v1169 = vadd.f32 0.0, %v1168
    %1170 = vmatmul.f32.gmra.mxu0 %v1083
    %v1171 = vpop.f32.mrf.mxu0
    %v1172 = vadd.f32 0.0, %v1171
    %1173 = vmatmul.f32.gmra.mxu0 %v1086
    %v1174 = vpop.f32.mrf.mxu0
    %v1175 = vadd.f32 0.0, %v1174
    %1176 = vmatmul.f32.gmra.mxu0 %v1089
    %v1177 = vpop.f32.mrf.mxu0
    %v1178 = vadd.f32 0.0, %v1177
    %1179 = vmatmul.f32.gmra.mxu0 %v1092
    %v1180 = vpop.f32.mrf.mxu0
    %v1181 = vadd.f32 0.0, %v1180
    %1182 = vmatmul.f32.gmra.mxu0 %v1095
    %v1183 = vpop.f32.mrf.mxu0
    %v1184 = vadd.f32 0.0, %v1183
    %1185 = vmatmul.f32.gmra.mxu0 %v1098
    %v1186 = vpop.f32.mrf.mxu0
    %v1187 = vadd.f32 0.0, %v1186
    %1188 = vmatmul.f32.gmra.mxu0 %v1101
    %v1189 = vpop.f32.mrf.mxu0
    %v1190 = vadd.f32 0.0, %v1189
    %1191 = vmatmul.f32.gmra.mxu0 %v1104
    %v1192 = vpop.f32.mrf.mxu0
    %v1193 = vadd.f32 0.0, %v1192
    %1194 = vdwg.mxu0
    %v1195 = vadd.f32 %v989, %v1127
    %v1196 = vadd.f32 %v990, %v1130
    %v1197 = vadd.f32 %v991, %v1133
    %v1198 = vadd.f32 %v992, %v1136
    %v1199 = vadd.f32 %v993, %v1139
    %v1200 = vadd.f32 %v994, %v1142
    %v1201 = vadd.f32 %v995, %v1145
    %v1202 = vadd.f32 %v996, %v1148
    %v1203 = vadd.f32 %v997, %v1151
    %v1204 = vadd.f32 %v998, %v1154
    %v1205 = vadd.f32 %v999, %v1157
    %v1206 = vadd.f32 %v1000, %v1160
    %v1207 = vadd.f32 %v1001, %v1163
    %v1208 = vadd.f32 %v1002, %v1166
    %v1209 = vadd.f32 %v1003, %v1169
    %v1210 = vadd.f32 %v1004, %v1172
    %v1211 = vadd.f32 %v1005, %v1175
    %v1212 = vadd.f32 %v1006, %v1178
    %v1213 = vadd.f32 %v1007, %v1181
    %v1214 = vadd.f32 %v1008, %v1184
    %v1215 = vadd.f32 %v1009, %v1187
    %v1216 = vadd.f32 %v1010, %v1190
    %v1217 = vadd.f32 %v1011, %v1193
    %v1218 = vld [vmem:[%s0 + $0x14] sm:$0xff]
    %v1219 = vld [vmem:[%s0 + $0x1c] sm:$0xff]
    %v1220 = vld [vmem:[%s0 + $0x24] sm:$0xff]
    %v1221 = vld [vmem:[%s0 + $0x2c] sm:$0xff]
    %v1222 = vld [vmem:[%s0 + $0x34] sm:$0xff]
    %v1223 = vld [vmem:[%s0 + $0x3c] sm:$0xff]
    %v1224 = vld [vmem:[%s0 + $0x44] sm:$0xff]
    %v1225 = vld [vmem:[%s0 + $0x4c] sm:$0xff]
    %v1226 = vld [vmem:[%s0 + $0x54] sm:$0xff]
    %v1227 = vld [vmem:[%s0 + $0x5c] sm:$0xff]
    %v1228 = vld [vmem:[%s0 + $0x64] sm:$0xff]
    %v1229 = vld [vmem:[%s0 + $0x6c] sm:$0xff]
    %v1230 = vld [vmem:[%s0 + $0x74] sm:$0xff]
    %v1231 = vld [vmem:[%s0 + $0x7c] sm:$0xff]
    %v1232 = vld [vmem:[%s0 + $0x84] sm:$0xff]
    %v1233 = vld [vmem:[%s0 + $0x8c] sm:$0xff]
    %v1234 = vld [vmem:[%s0 + $0x94] sm:$0xff]
    %v1235 = vld [vmem:[%s0 + $0x9c] sm:$0xff]
    %v1236 = vld [vmem:[%s0 + $0xa4] sm:$0xff]
    %v1237 = vld [vmem:[%s0 + $0xac] sm:$0xff]
    %v1238 = vld [vmem:[%s0 + $0xb4] sm:$0xff]
    %v1239 = vld [vmem:[%s0 + $0xbc] sm:$0xff]
    %v1240 = vld [vmem:[%s0 + $0xc4] sm:$0xff]
    %s1241 = scalar_lea.vmem %s1, 24
    %v1242 = vld [vmem:[%s1241] sm:$0xf]
    %v1244 = vsel %vm76, %v1218, 0
    %v1247 = vsel %vm76, %v1219, 0
    %v1250 = vsel %vm76, %v1220, 0
    %v1253 = vsel %vm76, %v1221, 0
    %v1256 = vsel %vm76, %v1222, 0
    %v1259 = vsel %vm76, %v1223, 0
    %v1262 = vsel %vm76, %v1224, 0
    %v1265 = vsel %vm76, %v1225, 0
    %v1268 = vsel %vm76, %v1226, 0
    %v1271 = vsel %vm76, %v1227, 0
    %v1274 = vsel %vm76, %v1228, 0
    %v1277 = vsel %vm76, %v1229, 0
    %v1280 = vsel %vm76, %v1230, 0
    %v1283 = vsel %vm76, %v1231, 0
    %v1286 = vsel %vm76, %v1232, 0
    %v1289 = vsel %vm76, %v1233, 0
    %v1292 = vsel %vm76, %v1234, 0
    %v1295 = vsel %vm76, %v1235, 0
    %v1298 = vsel %vm76, %v1236, 0
    %v1301 = vsel %vm76, %v1237, 0
    %v1304 = vsel %vm76, %v1238, 0
    %v1307 = vsel %vm76, %v1239, 0
    %v1310 = vsel %vm76, %v1240, 0
    %v1313 = vsel %vm146, %v1242, 0
    %1315 = vmatpush.msra.mxu0 0.0
    %1316 = vmatpush.msra.mxu0 0.0
    %1317 = vmatpush.msra.mxu0 0.0
    %1318 = vmatpush.msra.mxu0 0.0
    %1319 = vmatpush.msra.mxu0 0.0
    %1320 = vmatpush.msra.mxu0 0.0
    %1321 = vmatpush.msra.mxu0 0.0
    %1322 = vmatpush.msra.mxu0 0.0
    %1323 = vmatpush.msra.mxu0 0.0
    %1324 = vmatpush.msra.mxu0 0.0
    %1325 = vmatpush.msra.mxu0 0.0
    %1326 = vmatpush.msra.mxu0 0.0
    %1327 = vmatpush.msra.mxu0 0.0
    %1328 = vmatpush.msra.mxu0 0.0
    %1329 = vmatpush.msra.mxu0 0.0
    %1330 = vmatpush.msra.mxu0 %v1313
    %1331 = vmatmul.f32.gmra.mxu0 %v1244
    %v1332 = vpop.f32.mrf.mxu0
    %v1333 = vadd.f32 0.0, %v1332
    %1334 = vmatmul.f32.gmra.mxu0 %v1247
    %v1335 = vpop.f32.mrf.mxu0
    %v1336 = vadd.f32 0.0, %v1335
    %1337 = vmatmul.f32.gmra.mxu0 %v1250
    %v1338 = vpop.f32.mrf.mxu0
    %v1339 = vadd.f32 0.0, %v1338
    %1340 = vmatmul.f32.gmra.mxu0 %v1253
    %v1341 = vpop.f32.mrf.mxu0
    %v1342 = vadd.f32 0.0, %v1341
    %1343 = vmatmul.f32.gmra.mxu0 %v1256
    %v1344 = vpop.f32.mrf.mxu0
    %v1345 = vadd.f32 0.0, %v1344
    %1346 = vmatmul.f32.gmra.mxu0 %v1259
    %v1347 = vpop.f32.mrf.mxu0
    %v1348 = vadd.f32 0.0, %v1347
    %1349 = vmatmul.f32.gmra.mxu0 %v1262
    %v1350 = vpop.f32.mrf.mxu0
    %v1351 = vadd.f32 0.0, %v1350
    %1352 = vmatmul.f32.gmra.mxu0 %v1265
    %v1353 = vpop.f32.mrf.mxu0
    %v1354 = vadd.f32 0.0, %v1353
    %1355 = vmatmul.f32.gmra.mxu0 %v1268
    %v1356 = vpop.f32.mrf.mxu0
    %v1357 = vadd.f32 0.0, %v1356
    %1358 = vmatmul.f32.gmra.mxu0 %v1271
    %v1359 = vpop.f32.mrf.mxu0
    %v1360 = vadd.f32 0.0, %v1359
    %1361 = vmatmul.f32.gmra.mxu0 %v1274
    %v1362 = vpop.f32.mrf.mxu0
    %v1363 = vadd.f32 0.0, %v1362
    %1364 = vmatmul.f32.gmra.mxu0 %v1277
    %v1365 = vpop.f32.mrf.mxu0
    %v1366 = vadd.f32 0.0, %v1365
    %1367 = vmatmul.f32.gmra.mxu0 %v1280
    %v1368 = vpop.f32.mrf.mxu0
    %v1369 = vadd.f32 0.0, %v1368
    %1370 = vmatmul.f32.gmra.mxu0 %v1283
    %v1371 = vpop.f32.mrf.mxu0
    %v1372 = vadd.f32 0.0, %v1371
    %1373 = vmatmul.f32.gmra.mxu0 %v1286
    %v1374 = vpop.f32.mrf.mxu0
    %v1375 = vadd.f32 0.0, %v1374
    %1376 = vmatmul.f32.gmra.mxu0 %v1289
    %v1377 = vpop.f32.mrf.mxu0
    %v1378 = vadd.f32 0.0, %v1377
    %1379 = vmatmul.f32.gmra.mxu0 %v1292
    %v1380 = vpop.f32.mrf.mxu0
    %v1381 = vadd.f32 0.0, %v1380
    %1382 = vmatmul.f32.gmra.mxu0 %v1295
    %v1383 = vpop.f32.mrf.mxu0
    %v1384 = vadd.f32 0.0, %v1383
    %1385 = vmatmul.f32.gmra.mxu0 %v1298
    %v1386 = vpop.f32.mrf.mxu0
    %v1387 = vadd.f32 0.0, %v1386
    %1388 = vmatmul.f32.gmra.mxu0 %v1301
    %v1389 = vpop.f32.mrf.mxu0
    %v1390 = vadd.f32 0.0, %v1389
    %1391 = vmatmul.f32.gmra.mxu0 %v1304
    %v1392 = vpop.f32.mrf.mxu0
    %v1393 = vadd.f32 0.0, %v1392
    %1394 = vmatmul.f32.gmra.mxu0 %v1307
    %v1395 = vpop.f32.mrf.mxu0
    %v1396 = vadd.f32 0.0, %v1395
    %1397 = vmatmul.f32.gmra.mxu0 %v1310
    %v1398 = vpop.f32.mrf.mxu0
    %v1399 = vadd.f32 0.0, %v1398
    %1400 = vdwg.mxu0
    %v1401 = vadd.f32 %v1195, %v1333
    %v1402 = vadd.f32 %v1196, %v1336
    %v1403 = vadd.f32 %v1197, %v1339
    %v1404 = vadd.f32 %v1198, %v1342
    %v1405 = vadd.f32 %v1199, %v1345
    %v1406 = vadd.f32 %v1200, %v1348
    %v1407 = vadd.f32 %v1201, %v1351
    %v1408 = vadd.f32 %v1202, %v1354
    %v1409 = vadd.f32 %v1203, %v1357
    %v1410 = vadd.f32 %v1204, %v1360
    %v1411 = vadd.f32 %v1205, %v1363
    %v1412 = vadd.f32 %v1206, %v1366
    %v1413 = vadd.f32 %v1207, %v1369
    %v1414 = vadd.f32 %v1208, %v1372
    %v1415 = vadd.f32 %v1209, %v1375
    %v1416 = vadd.f32 %v1210, %v1378
    %v1417 = vadd.f32 %v1211, %v1381
    %v1418 = vadd.f32 %v1212, %v1384
    %v1419 = vadd.f32 %v1213, %v1387
    %v1420 = vadd.f32 %v1214, %v1390
    %v1421 = vadd.f32 %v1215, %v1393
    %v1422 = vadd.f32 %v1216, %v1396
    %v1423 = vadd.f32 %v1217, %v1399
    %v1424 = vld [vmem:[%s0 + $0x15] sm:$0xff]
    %v1425 = vld [vmem:[%s0 + $0x1d] sm:$0xff]
    %v1426 = vld [vmem:[%s0 + $0x25] sm:$0xff]
    %v1427 = vld [vmem:[%s0 + $0x2d] sm:$0xff]
    %v1428 = vld [vmem:[%s0 + $0x35] sm:$0xff]
    %v1429 = vld [vmem:[%s0 + $0x3d] sm:$0xff]
    %v1430 = vld [vmem:[%s0 + $0x45] sm:$0xff]
    %v1431 = vld [vmem:[%s0 + $0x4d] sm:$0xff]
    %v1432 = vld [vmem:[%s0 + $0x55] sm:$0xff]
    %v1433 = vld [vmem:[%s0 + $0x5d] sm:$0xff]
    %v1434 = vld [vmem:[%s0 + $0x65] sm:$0xff]
    %v1435 = vld [vmem:[%s0 + $0x6d] sm:$0xff]
    %v1436 = vld [vmem:[%s0 + $0x75] sm:$0xff]
    %v1437 = vld [vmem:[%s0 + $0x7d] sm:$0xff]
    %v1438 = vld [vmem:[%s0 + $0x85] sm:$0xff]
    %v1439 = vld [vmem:[%s0 + $0x8d] sm:$0xff]
    %v1440 = vld [vmem:[%s0 + $0x95] sm:$0xff]
    %v1441 = vld [vmem:[%s0 + $0x9d] sm:$0xff]
    %v1442 = vld [vmem:[%s0 + $0xa5] sm:$0xff]
    %v1443 = vld [vmem:[%s0 + $0xad] sm:$0xff]
    %v1444 = vld [vmem:[%s0 + $0xb5] sm:$0xff]
    %v1445 = vld [vmem:[%s0 + $0xbd] sm:$0xff]
    %v1446 = vld [vmem:[%s0 + $0xc5] sm:$0xff]
    %s1447 = scalar_lea.vmem %s1, 28
    %v1448 = vld [vmem:[%s1447] sm:$0xf]
    %v1450 = vsel %vm76, %v1424, 0
    %v1453 = vsel %vm76, %v1425, 0
    %v1456 = vsel %vm76, %v1426, 0
    %v1459 = vsel %vm76, %v1427, 0
    %v1462 = vsel %vm76, %v1428, 0
    %v1465 = vsel %vm76, %v1429, 0
    %v1468 = vsel %vm76, %v1430, 0
    %v1471 = vsel %vm76, %v1431, 0
    %v1474 = vsel %vm76, %v1432, 0
    %v1477 = vsel %vm76, %v1433, 0
    %v1480 = vsel %vm76, %v1434, 0
    %v1483 = vsel %vm76, %v1435, 0
    %v1486 = vsel %vm76, %v1436, 0
    %v1489 = vsel %vm76, %v1437, 0
    %v1492 = vsel %vm76, %v1438, 0
    %v1495 = vsel %vm76, %v1439, 0
    %v1498 = vsel %vm76, %v1440, 0
    %v1501 = vsel %vm76, %v1441, 0
    %v1504 = vsel %vm76, %v1442, 0
    %v1507 = vsel %vm76, %v1443, 0
    %v1510 = vsel %vm76, %v1444, 0
    %v1513 = vsel %vm76, %v1445, 0
    %v1516 = vsel %vm76, %v1446, 0
    %v1519 = vsel %vm146, %v1448, 0
    %1521 = vmatpush.msra.mxu0 0.0
    %1522 = vmatpush.msra.mxu0 0.0
    %1523 = vmatpush.msra.mxu0 0.0
    %1524 = vmatpush.msra.mxu0 0.0
    %1525 = vmatpush.msra.mxu0 0.0
    %1526 = vmatpush.msra.mxu0 0.0
    %1527 = vmatpush.msra.mxu0 0.0
    %1528 = vmatpush.msra.mxu0 0.0
    %1529 = vmatpush.msra.mxu0 0.0
    %1530 = vmatpush.msra.mxu0 0.0
    %1531 = vmatpush.msra.mxu0 0.0
    %1532 = vmatpush.msra.mxu0 0.0
    %1533 = vmatpush.msra.mxu0 0.0
    %1534 = vmatpush.msra.mxu0 0.0
    %1535 = vmatpush.msra.mxu0 0.0
    %1536 = vmatpush.msra.mxu0 %v1519
    %1537 = vmatmul.f32.gmra.mxu0 %v1450
    %v1538 = vpop.f32.mrf.mxu0
    %v1539 = vadd.f32 0.0, %v1538
    %1540 = vmatmul.f32.gmra.mxu0 %v1453
    %v1541 = vpop.f32.mrf.mxu0
    %v1542 = vadd.f32 0.0, %v1541
    %1543 = vmatmul.f32.gmra.mxu0 %v1456
    %v1544 = vpop.f32.mrf.mxu0
    %v1545 = vadd.f32 0.0, %v1544
    %1546 = vmatmul.f32.gmra.mxu0 %v1459
    %v1547 = vpop.f32.mrf.mxu0
    %v1548 = vadd.f32 0.0, %v1547
    %1549 = vmatmul.f32.gmra.mxu0 %v1462
    %v1550 = vpop.f32.mrf.mxu0
    %v1551 = vadd.f32 0.0, %v1550
    %1552 = vmatmul.f32.gmra.mxu0 %v1465
    %v1553 = vpop.f32.mrf.mxu0
    %v1554 = vadd.f32 0.0, %v1553
    %1555 = vmatmul.f32.gmra.mxu0 %v1468
    %v1556 = vpop.f32.mrf.mxu0
    %v1557 = vadd.f32 0.0, %v1556
    %1558 = vmatmul.f32.gmra.mxu0 %v1471
    %v1559 = vpop.f32.mrf.mxu0
    %v1560 = vadd.f32 0.0, %v1559
    %1561 = vmatmul.f32.gmra.mxu0 %v1474
    %v1562 = vpop.f32.mrf.mxu0
    %v1563 = vadd.f32 0.0, %v1562
    %1564 = vmatmul.f32.gmra.mxu0 %v1477
    %v1565 = vpop.f32.mrf.mxu0
    %v1566 = vadd.f32 0.0, %v1565
    %1567 = vmatmul.f32.gmra.mxu0 %v1480
    %v1568 = vpop.f32.mrf.mxu0
    %v1569 = vadd.f32 0.0, %v1568
    %1570 = vmatmul.f32.gmra.mxu0 %v1483
    %v1571 = vpop.f32.mrf.mxu0
    %v1572 = vadd.f32 0.0, %v1571
    %1573 = vmatmul.f32.gmra.mxu0 %v1486
    %v1574 = vpop.f32.mrf.mxu0
    %v1575 = vadd.f32 0.0, %v1574
    %1576 = vmatmul.f32.gmra.mxu0 %v1489
    %v1577 = vpop.f32.mrf.mxu0
    %v1578 = vadd.f32 0.0, %v1577
    %1579 = vmatmul.f32.gmra.mxu0 %v1492
    %v1580 = vpop.f32.mrf.mxu0
    %v1581 = vadd.f32 0.0, %v1580
    %1582 = vmatmul.f32.gmra.mxu0 %v1495
    %v1583 = vpop.f32.mrf.mxu0
    %v1584 = vadd.f32 0.0, %v1583
    %1585 = vmatmul.f32.gmra.mxu0 %v1498
    %v1586 = vpop.f32.mrf.mxu0
    %v1587 = vadd.f32 0.0, %v1586
    %1588 = vmatmul.f32.gmra.mxu0 %v1501
    %v1589 = vpop.f32.mrf.mxu0
    %v1590 = vadd.f32 0.0, %v1589
    %1591 = vmatmul.f32.gmra.mxu0 %v1504
    %v1592 = vpop.f32.mrf.mxu0
    %v1593 = vadd.f32 0.0, %v1592
    %1594 = vmatmul.f32.gmra.mxu0 %v1507
    %v1595 = vpop.f32.mrf.mxu0
    %v1596 = vadd.f32 0.0, %v1595
    %1597 = vmatmul.f32.gmra.mxu0 %v1510
    %v1598 = vpop.f32.mrf.mxu0
    %v1599 = vadd.f32 0.0, %v1598
    %1600 = vmatmul.f32.gmra.mxu0 %v1513
    %v1601 = vpop.f32.mrf.mxu0
    %v1602 = vadd.f32 0.0, %v1601
    %1603 = vmatmul.f32.gmra.mxu0 %v1516
    %v1604 = vpop.f32.mrf.mxu0
    %v1605 = vadd.f32 0.0, %v1604
    %1606 = vdwg.mxu0
    %v1607 = vadd.f32 %v1401, %v1539
    %v1608 = vadd.f32 %v1402, %v1542
    %v1609 = vadd.f32 %v1403, %v1545
    %v1610 = vadd.f32 %v1404, %v1548
    %v1611 = vadd.f32 %v1405, %v1551
    %v1612 = vadd.f32 %v1406, %v1554
    %v1613 = vadd.f32 %v1407, %v1557
    %v1614 = vadd.f32 %v1408, %v1560
    %v1615 = vadd.f32 %v1409, %v1563
    %v1616 = vadd.f32 %v1410, %v1566
    %v1617 = vadd.f32 %v1411, %v1569
    %v1618 = vadd.f32 %v1412, %v1572
    %v1619 = vadd.f32 %v1413, %v1575
    %v1620 = vadd.f32 %v1414, %v1578
    %v1621 = vadd.f32 %v1415, %v1581
    %v1622 = vadd.f32 %v1416, %v1584
    %v1623 = vadd.f32 %v1417, %v1587
    %v1624 = vadd.f32 %v1418, %v1590
    %v1625 = vadd.f32 %v1419, %v1593
    %v1626 = vadd.f32 %v1420, %v1596
    %v1627 = vadd.f32 %v1421, %v1599
    %v1628 = vadd.f32 %v1422, %v1602
    %v1629 = vadd.f32 %v1423, %v1605
    %v1630 = vld [vmem:[%s0 + $0x16] sm:$0xff]
    %v1631 = vld [vmem:[%s0 + $0x1e] sm:$0xff]
    %v1632 = vld [vmem:[%s0 + $0x26] sm:$0xff]
    %v1633 = vld [vmem:[%s0 + $0x2e] sm:$0xff]
    %v1634 = vld [vmem:[%s0 + $0x36] sm:$0xff]
    %v1635 = vld [vmem:[%s0 + $0x3e] sm:$0xff]
    %v1636 = vld [vmem:[%s0 + $0x46] sm:$0xff]
    %v1637 = vld [vmem:[%s0 + $0x4e] sm:$0xff]
    %v1638 = vld [vmem:[%s0 + $0x56] sm:$0xff]
    %v1639 = vld [vmem:[%s0 + $0x5e] sm:$0xff]
    %v1640 = vld [vmem:[%s0 + $0x66] sm:$0xff]
    %v1641 = vld [vmem:[%s0 + $0x6e] sm:$0xff]
    %v1642 = vld [vmem:[%s0 + $0x76] sm:$0xff]
    %v1643 = vld [vmem:[%s0 + $0x7e] sm:$0xff]
    %v1644 = vld [vmem:[%s0 + $0x86] sm:$0xff]
    %v1645 = vld [vmem:[%s0 + $0x8e] sm:$0xff]
    %v1646 = vld [vmem:[%s0 + $0x96] sm:$0xff]
    %v1647 = vld [vmem:[%s0 + $0x9e] sm:$0xff]
    %v1648 = vld [vmem:[%s0 + $0xa6] sm:$0xff]
    %v1649 = vld [vmem:[%s0 + $0xae] sm:$0xff]
    %v1650 = vld [vmem:[%s0 + $0xb6] sm:$0xff]
    %v1651 = vld [vmem:[%s0 + $0xbe] sm:$0xff]
    %v1652 = vld [vmem:[%s0 + $0xc6] sm:$0xff]
    %s1653 = scalar_lea.vmem %s1, 32
    %v1654 = vld [vmem:[%s1653] sm:$0xf]
    %v1656 = vsel %vm76, %v1630, 0
    %v1659 = vsel %vm76, %v1631, 0
    %v1662 = vsel %vm76, %v1632, 0
    %v1665 = vsel %vm76, %v1633, 0
    %v1668 = vsel %vm76, %v1634, 0
    %v1671 = vsel %vm76, %v1635, 0
    %v1674 = vsel %vm76, %v1636, 0
    %v1677 = vsel %vm76, %v1637, 0
    %v1680 = vsel %vm76, %v1638, 0
    %v1683 = vsel %vm76, %v1639, 0
    %v1686 = vsel %vm76, %v1640, 0
    %v1689 = vsel %vm76, %v1641, 0
    %v1692 = vsel %vm76, %v1642, 0
    %v1695 = vsel %vm76, %v1643, 0
    %v1698 = vsel %vm76, %v1644, 0
    %v1701 = vsel %vm76, %v1645, 0
    %v1704 = vsel %vm76, %v1646, 0
    %v1707 = vsel %vm76, %v1647, 0
    %v1710 = vsel %vm76, %v1648, 0
    %v1713 = vsel %vm76, %v1649, 0
    %v1716 = vsel %vm76, %v1650, 0
    %v1719 = vsel %vm76, %v1651, 0
    %v1722 = vsel %vm76, %v1652, 0
    %v1725 = vsel %vm146, %v1654, 0
    %1727 = vmatpush.msra.mxu0 0.0
    %1728 = vmatpush.msra.mxu0 0.0
    %1729 = vmatpush.msra.mxu0 0.0
    %1730 = vmatpush.msra.mxu0 0.0
    %1731 = vmatpush.msra.mxu0 0.0
    %1732 = vmatpush.msra.mxu0 0.0
    %1733 = vmatpush.msra.mxu0 0.0
    %1734 = vmatpush.msra.mxu0 0.0
    %1735 = vmatpush.msra.mxu0 0.0
    %1736 = vmatpush.msra.mxu0 0.0
    %1737 = vmatpush.msra.mxu0 0.0
    %1738 = vmatpush.msra.mxu0 0.0
    %1739 = vmatpush.msra.mxu0 0.0
    %1740 = vmatpush.msra.mxu0 0.0
    %1741 = vmatpush.msra.mxu0 0.0
    %1742 = vmatpush.msra.mxu0 %v1725
    %1743 = vmatmul.f32.gmra.mxu0 %v1656
    %v1744 = vpop.f32.mrf.mxu0
    %v1745 = vadd.f32 0.0, %v1744
    %1746 = vmatmul.f32.gmra.mxu0 %v1659
    %v1747 = vpop.f32.mrf.mxu0
    %v1748 = vadd.f32 0.0, %v1747
    %1749 = vmatmul.f32.gmra.mxu0 %v1662
    %v1750 = vpop.f32.mrf.mxu0
    %v1751 = vadd.f32 0.0, %v1750
    %1752 = vmatmul.f32.gmra.mxu0 %v1665
    %v1753 = vpop.f32.mrf.mxu0
    %v1754 = vadd.f32 0.0, %v1753
    %1755 = vmatmul.f32.gmra.mxu0 %v1668
    %v1756 = vpop.f32.mrf.mxu0
    %v1757 = vadd.f32 0.0, %v1756
    %1758 = vmatmul.f32.gmra.mxu0 %v1671
    %v1759 = vpop.f32.mrf.mxu0
    %v1760 = vadd.f32 0.0, %v1759
    %1761 = vmatmul.f32.gmra.mxu0 %v1674
    %v1762 = vpop.f32.mrf.mxu0
    %v1763 = vadd.f32 0.0, %v1762
    %1764 = vmatmul.f32.gmra.mxu0 %v1677
    %v1765 = vpop.f32.mrf.mxu0
    %v1766 = vadd.f32 0.0, %v1765
    %1767 = vmatmul.f32.gmra.mxu0 %v1680
    %v1768 = vpop.f32.mrf.mxu0
    %v1769 = vadd.f32 0.0, %v1768
    %1770 = vmatmul.f32.gmra.mxu0 %v1683
    %v1771 = vpop.f32.mrf.mxu0
    %v1772 = vadd.f32 0.0, %v1771
    %1773 = vmatmul.f32.gmra.mxu0 %v1686
    %v1774 = vpop.f32.mrf.mxu0
    %v1775 = vadd.f32 0.0, %v1774
    %1776 = vmatmul.f32.gmra.mxu0 %v1689
    %v1777 = vpop.f32.mrf.mxu0
    %v1778 = vadd.f32 0.0, %v1777
    %1779 = vmatmul.f32.gmra.mxu0 %v1692
    %v1780 = vpop.f32.mrf.mxu0
    %v1781 = vadd.f32 0.0, %v1780
    %1782 = vmatmul.f32.gmra.mxu0 %v1695
    %v1783 = vpop.f32.mrf.mxu0
    %v1784 = vadd.f32 0.0, %v1783
    %1785 = vmatmul.f32.gmra.mxu0 %v1698
    %v1786 = vpop.f32.mrf.mxu0
    %v1787 = vadd.f32 0.0, %v1786
    %1788 = vmatmul.f32.gmra.mxu0 %v1701
    %v1789 = vpop.f32.mrf.mxu0
    %v1790 = vadd.f32 0.0, %v1789
    %1791 = vmatmul.f32.gmra.mxu0 %v1704
    %v1792 = vpop.f32.mrf.mxu0
    %v1793 = vadd.f32 0.0, %v1792
    %1794 = vmatmul.f32.gmra.mxu0 %v1707
    %v1795 = vpop.f32.mrf.mxu0
    %v1796 = vadd.f32 0.0, %v1795
    %1797 = vmatmul.f32.gmra.mxu0 %v1710
    %v1798 = vpop.f32.mrf.mxu0
    %v1799 = vadd.f32 0.0, %v1798
    %1800 = vmatmul.f32.gmra.mxu0 %v1713
    %v1801 = vpop.f32.mrf.mxu0
    %v1802 = vadd.f32 0.0, %v1801
    %1803 = vmatmul.f32.gmra.mxu0 %v1716
    %v1804 = vpop.f32.mrf.mxu0
    %v1805 = vadd.f32 0.0, %v1804
    %1806 = vmatmul.f32.gmra.mxu0 %v1719
    %v1807 = vpop.f32.mrf.mxu0
    %v1808 = vadd.f32 0.0, %v1807
    %1809 = vmatmul.f32.gmra.mxu0 %v1722
    %v1810 = vpop.f32.mrf.mxu0
    %v1811 = vadd.f32 0.0, %v1810
    %1812 = vdwg.mxu0
    %v1813 = vadd.f32 %v1607, %v1745
    %v1814 = vadd.f32 %v1608, %v1748
    %v1815 = vadd.f32 %v1609, %v1751
    %v1816 = vadd.f32 %v1610, %v1754
    %v1817 = vadd.f32 %v1611, %v1757
    %v1818 = vadd.f32 %v1612, %v1760
    %v1819 = vadd.f32 %v1613, %v1763
    %v1820 = vadd.f32 %v1614, %v1766
    %v1821 = vadd.f32 %v1615, %v1769
    %v1822 = vadd.f32 %v1616, %v1772
    %v1823 = vadd.f32 %v1617, %v1775
    %v1824 = vadd.f32 %v1618, %v1778
    %v1825 = vadd.f32 %v1619, %v1781
    %v1826 = vadd.f32 %v1620, %v1784
    %v1827 = vadd.f32 %v1621, %v1787
    %v1828 = vadd.f32 %v1622, %v1790
    %v1829 = vadd.f32 %v1623, %v1793
    %v1830 = vadd.f32 %v1624, %v1796
    %v1831 = vadd.f32 %v1625, %v1799
    %v1832 = vadd.f32 %v1626, %v1802
    %v1833 = vadd.f32 %v1627, %v1805
    %v1834 = vadd.f32 %v1628, %v1808
    %v1835 = vadd.f32 %v1629, %v1811
    %v1836 = vld [vmem:[%s2] sm:$0x1]
    %v1838 = vperm.slane %v1836, 0
    %v1840 = vadd.f32 %v1813, %v1838
    %v1841 = vadd.f32 %v1814, %v1838
    %v1842 = vadd.f32 %v1815, %v1838
    %v1843 = vadd.f32 %v1816, %v1838
    %v1844 = vadd.f32 %v1817, %v1838
    %v1845 = vadd.f32 %v1818, %v1838
    %v1846 = vadd.f32 %v1819, %v1838
    %v1847 = vadd.f32 %v1820, %v1838
    %v1848 = vadd.f32 %v1821, %v1838
    %v1849 = vadd.f32 %v1822, %v1838
    %v1850 = vadd.f32 %v1823, %v1838
    %v1851 = vadd.f32 %v1824, %v1838
    %v1852 = vadd.f32 %v1825, %v1838
    %v1853 = vadd.f32 %v1826, %v1838
    %v1854 = vadd.f32 %v1827, %v1838
    %v1855 = vadd.f32 %v1828, %v1838
    %v1856 = vadd.f32 %v1829, %v1838
    %v1857 = vadd.f32 %v1830, %v1838
    %v1858 = vadd.f32 %v1831, %v1838
    %v1859 = vadd.f32 %v1832, %v1838
    %v1860 = vadd.f32 %v1833, %v1838
    %v1861 = vadd.f32 %v1834, %v1838
    %v1862 = vadd.f32 %v1835, %v1838
    %v1863 = vmax.f32 %v1840, 0.0
    %v1864 = vmax.f32 %v1841, 0.0
    %v1865 = vmax.f32 %v1842, 0.0
    %v1866 = vmax.f32 %v1843, 0.0
    %v1867 = vmax.f32 %v1844, 0.0
    %v1868 = vmax.f32 %v1845, 0.0
    %v1869 = vmax.f32 %v1846, 0.0
    %v1870 = vmax.f32 %v1847, 0.0
    %v1871 = vmax.f32 %v1848, 0.0
    %v1872 = vmax.f32 %v1849, 0.0
    %v1873 = vmax.f32 %v1850, 0.0
    %v1874 = vmax.f32 %v1851, 0.0
    %v1875 = vmax.f32 %v1852, 0.0
    %v1876 = vmax.f32 %v1853, 0.0
    %v1877 = vmax.f32 %v1854, 0.0
    %v1878 = vmax.f32 %v1855, 0.0
    %v1879 = vmax.f32 %v1856, 0.0
    %v1880 = vmax.f32 %v1857, 0.0
    %v1881 = vmax.f32 %v1858, 0.0
    %v1882 = vmax.f32 %v1859, 0.0
    %v1883 = vmax.f32 %v1860, 0.0
    %v1884 = vmax.f32 %v1861, 0.0
    %v1885 = vmax.f32 %v1862, 0.0
    %v1886 = vld [vmem:[%s3] sm:$0xff]
    %v1887 = vld [vmem:[%s3 + $0x8] sm:$0xff]
    %v1888 = vld [vmem:[%s3 + $0x10] sm:$0xff]
    %v1889 = vld [vmem:[%s3 + $0x18] sm:$0xff]
    %v1890 = vld [vmem:[%s4] sm:$0x1]
    %v1892 = vperm.slane %v1890, 0
    %vm1894 = vcmask 261120
    %v1896 = vsel %vm1894, %v1863, 0
    %v1899 = vsel %vm1894, %v1864, 0
    %v1902 = vsel %vm1894, %v1865, 0
    %v1905 = vsel %vm1894, %v1866, 0
    %v1908 = vsel %vm1894, %v1867, 0
    %v1911 = vsel %vm1894, %v1868, 0
    %v1914 = vsel %vm1894, %v1869, 0
    %v1917 = vsel %vm1894, %v1870, 0
    %v1920 = vsel %vm1894, %v1871, 0
    %v1923 = vsel %vm1894, %v1872, 0
    %v1926 = vsel %vm1894, %v1873, 0
    %v1929 = vsel %vm1894, %v1874, 0
    %v1932 = vsel %vm1894, %v1875, 0
    %v1935 = vsel %vm1894, %v1876, 0
    %v1938 = vsel %vm1894, %v1877, 0
    %v1941 = vsel %vm1894, %v1878, 0
    %v1944 = vsel %vm1894, %v1879, 0
    %v1947 = vsel %vm1894, %v1880, 0
    %v1950 = vsel %vm1894, %v1881, 0
    %v1953 = vsel %vm1894, %v1882, 0
    %v1956 = vsel %vm1894, %v1883, 0
    %v1959 = vsel %vm1894, %v1884, 0
    %v1962 = vsel %vm1894, %v1885, 0
    %1964 = vmatpush.msra.mxu0 0.0
    %1965 = vmatpush.msra.mxu0 0.0
    %1966 = vmatpush.msra.mxu0 0.0
    %1967 = vmatpush.msra.mxu0 0.0
    %1968 = vmatpush.msra.mxu0 0.0
    %1969 = vmatpush.msra.mxu0 0.0
    %1970 = vmatpush.msra.mxu0 0.0
    %1971 = vmatpush.msra.mxu0 0.0
    %1972 = vmatpush.msra.mxu0 0.0
    %1973 = vmatpush.msra.mxu0 0.0
    %1974 = vmatpush.msra.mxu0 0.0
    %1975 = vmatpush.msra.mxu0 0.0
    %1976 = vmatpush.msra.mxu0 %v1889
    %1977 = vmatpush.msra.mxu0 %v1888
    %1978 = vmatpush.msra.mxu0 %v1887
    %1979 = vmatpush.msra.mxu0 %v1886
    %1980 = vmatmul.f32.gmra.mxu0 %v1896
    %v1981 = vpop.f32.mrf.mxu0
    %v1982 = vadd.f32 %v1892, %v1981
    %1983 = vmatmul.f32.gmra.mxu0 %v1899
    %v1984 = vpop.f32.mrf.mxu0
    %v1985 = vadd.f32 %v1892, %v1984
    %1986 = vmatmul.f32.gmra.mxu0 %v1902
    %v1987 = vpop.f32.mrf.mxu0
    %v1988 = vadd.f32 %v1892, %v1987
    %1989 = vmatmul.f32.gmra.mxu0 %v1905
    %v1990 = vpop.f32.mrf.mxu0
    %v1991 = vadd.f32 %v1892, %v1990
    %1992 = vmatmul.f32.gmra.mxu0 %v1908
    %v1993 = vpop.f32.mrf.mxu0
    %v1994 = vadd.f32 %v1892, %v1993
    %1995 = vmatmul.f32.gmra.mxu0 %v1911
    %v1996 = vpop.f32.mrf.mxu0
    %v1997 = vadd.f32 %v1892, %v1996
    %1998 = vmatmul.f32.gmra.mxu0 %v1914
    %v1999 = vpop.f32.mrf.mxu0
    %v2000 = vadd.f32 %v1892, %v1999
    %2001 = vmatmul.f32.gmra.mxu0 %v1917
    %v2002 = vpop.f32.mrf.mxu0
    %v2003 = vadd.f32 %v1892, %v2002
    %2004 = vmatmul.f32.gmra.mxu0 %v1920
    %v2005 = vpop.f32.mrf.mxu0
    %v2006 = vadd.f32 %v1892, %v2005
    %2007 = vmatmul.f32.gmra.mxu0 %v1923
    %v2008 = vpop.f32.mrf.mxu0
    %v2009 = vadd.f32 %v1892, %v2008
    %2010 = vmatmul.f32.gmra.mxu0 %v1926
    %v2011 = vpop.f32.mrf.mxu0
    %v2012 = vadd.f32 %v1892, %v2011
    %2013 = vmatmul.f32.gmra.mxu0 %v1929
    %v2014 = vpop.f32.mrf.mxu0
    %v2015 = vadd.f32 %v1892, %v2014
    %2016 = vmatmul.f32.gmra.mxu0 %v1932
    %v2017 = vpop.f32.mrf.mxu0
    %v2018 = vadd.f32 %v1892, %v2017
    %2019 = vmatmul.f32.gmra.mxu0 %v1935
    %v2020 = vpop.f32.mrf.mxu0
    %v2021 = vadd.f32 %v1892, %v2020
    %2022 = vmatmul.f32.gmra.mxu0 %v1938
    %v2023 = vpop.f32.mrf.mxu0
    %v2024 = vadd.f32 %v1892, %v2023
    %2025 = vmatmul.f32.gmra.mxu0 %v1941
    %v2026 = vpop.f32.mrf.mxu0
    %v2027 = vadd.f32 %v1892, %v2026
    %2028 = vmatmul.f32.gmra.mxu0 %v1944
    %v2029 = vpop.f32.mrf.mxu0
    %v2030 = vadd.f32 %v1892, %v2029
    %2031 = vmatmul.f32.gmra.mxu0 %v1947
    %v2032 = vpop.f32.mrf.mxu0
    %v2033 = vadd.f32 %v1892, %v2032
    %2034 = vmatmul.f32.gmra.mxu0 %v1950
    %v2035 = vpop.f32.mrf.mxu0
    %v2036 = vadd.f32 %v1892, %v2035
    %2037 = vmatmul.f32.gmra.mxu0 %v1953
    %v2038 = vpop.f32.mrf.mxu0
    %v2039 = vadd.f32 %v1892, %v2038
    %2040 = vmatmul.f32.gmra.mxu0 %v1956
    %v2041 = vpop.f32.mrf.mxu0
    %v2042 = vadd.f32 %v1892, %v2041
    %2043 = vmatmul.f32.gmra.mxu0 %v1959
    %v2044 = vpop.f32.mrf.mxu0
    %v2045 = vadd.f32 %v1892, %v2044
    %2046 = vmatmul.f32.gmra.mxu0 %v1962
    %v2047 = vpop.f32.mrf.mxu0
    %v2048 = vadd.f32 %v1892, %v2047
    %2049 = vdwg.mxu0
    %v2050 = vmax.f32 %v1982, 0.0
    %v2051 = vmax.f32 %v1985, 0.0
    %v2052 = vmax.f32 %v1988, 0.0
    %v2053 = vmax.f32 %v1991, 0.0
    %v2054 = vmax.f32 %v1994, 0.0
    %v2055 = vmax.f32 %v1997, 0.0
    %v2056 = vmax.f32 %v2000, 0.0
    %v2057 = vmax.f32 %v2003, 0.0
    %v2058 = vmax.f32 %v2006, 0.0
    %v2059 = vmax.f32 %v2009, 0.0
    %v2060 = vmax.f32 %v2012, 0.0
    %v2061 = vmax.f32 %v2015, 0.0
    %v2062 = vmax.f32 %v2018, 0.0
    %v2063 = vmax.f32 %v2021, 0.0
    %v2064 = vmax.f32 %v2024, 0.0
    %v2065 = vmax.f32 %v2027, 0.0
    %v2066 = vmax.f32 %v2030, 0.0
    %v2067 = vmax.f32 %v2033, 0.0
    %v2068 = vmax.f32 %v2036, 0.0
    %v2069 = vmax.f32 %v2039, 0.0
    %v2070 = vmax.f32 %v2042, 0.0
    %v2071 = vmax.f32 %v2045, 0.0
    %v2072 = vmax.f32 %v2048, 0.0
    %v2073 = vld [vmem:[%s5] sm:$0xff]
    %v2074 = vld [vmem:[%s5 + $0x8] sm:$0xff]
    %v2075 = vld [vmem:[%s5 + $0x10] sm:$0xff]
    %v2076 = vld [vmem:[%s5 + $0x18] sm:$0xff]
    %v2077 = vld [vmem:[%s5 + $0x20] sm:$0xff]
    %v2078 = vld [vmem:[%s5 + $0x28] sm:$0xff]
    %v2079 = vld [vmem:[%s5 + $0x30] sm:$0xff]
    %v2080 = vld [vmem:[%s5 + $0x38] sm:$0xff]
    %v2081 = vld [vmem:[%s5 + $0x40] sm:$0xff]
    %v2082 = vld [vmem:[%s5 + $0x48] sm:$0xff]
    %v2083 = vld [vmem:[%s5 + $0x50] sm:$0xff]
    %v2084 = vld [vmem:[%s5 + $0x58] sm:$0xff]
    %v2085 = vld [vmem:[%s5 + $0x60] sm:$0xff]
    %v2086 = vld [vmem:[%s5 + $0x68] sm:$0xff]
    %v2087 = vld [vmem:[%s5 + $0x70] sm:$0xff]
    %v2088 = vld [vmem:[%s5 + $0x78] sm:$0xff]
    %v2089 = vld [vmem:[%s5 + $0x80] sm:$0xff]
    %v2090 = vld [vmem:[%s5 + $0x88] sm:$0xff]
    %v2091 = vld [vmem:[%s5 + $0x90] sm:$0xff]
    %v2092 = vld [vmem:[%s5 + $0x98] sm:$0xff]
    %v2093 = vld [vmem:[%s5 + $0xa0] sm:$0xff]
    %v2094 = vld [vmem:[%s5 + $0xa8] sm:$0xff]
    %v2095 = vld [vmem:[%s5 + $0xb0] sm:$0xff]
    %2097 = vset.pattern.permute.xlu0 0
    %2098 = vperm.xlu0 %2097, %v2050
    %v2099 = vpop.permute.xlu0 %2098
    %2102 = vset.pattern.permute.xlu0 0
    %2103 = vperm.xlu0 %2102, %v2051
    %v2104 = vpop.permute.xlu0 %2103
    %2107 = vset.pattern.permute.xlu0 0
    %2108 = vperm.xlu0 %2107, %v2052
    %v2109 = vpop.permute.xlu0 %2108
    %2112 = vset.pattern.permute.xlu0 0
    %2113 = vperm.xlu0 %2112, %v2053
    %v2114 = vpop.permute.xlu0 %2113
    %2117 = vset.pattern.permute.xlu0 0
    %2118 = vperm.xlu0 %2117, %v2054
    %v2119 = vpop.permute.xlu0 %2118
    %2122 = vset.pattern.permute.xlu0 0
    %2123 = vperm.xlu0 %2122, %v2055
    %v2124 = vpop.permute.xlu0 %2123
    %2127 = vset.pattern.permute.xlu0 0
    %2128 = vperm.xlu0 %2127, %v2056
    %v2129 = vpop.permute.xlu0 %2128
    %2132 = vset.pattern.permute.xlu0 0
    %2133 = vperm.xlu0 %2132, %v2057
    %v2134 = vpop.permute.xlu0 %2133
    %2137 = vset.pattern.permute.xlu0 0
    %2138 = vperm.xlu0 %2137, %v2058
    %v2139 = vpop.permute.xlu0 %2138
    %2142 = vset.pattern.permute.xlu0 0
    %2143 = vperm.xlu0 %2142, %v2059
    %v2144 = vpop.permute.xlu0 %2143
    %2147 = vset.pattern.permute.xlu0 0
    %2148 = vperm.xlu0 %2147, %v2060
    %v2149 = vpop.permute.xlu0 %2148
    %2152 = vset.pattern.permute.xlu0 0
    %2153 = vperm.xlu0 %2152, %v2061
    %v2154 = vpop.permute.xlu0 %2153
    %2157 = vset.pattern.permute.xlu0 0
    %2158 = vperm.xlu0 %2157, %v2062
    %v2159 = vpop.permute.xlu0 %2158
    %2162 = vset.pattern.permute.xlu0 0
    %2163 = vperm.xlu0 %2162, %v2063
    %v2164 = vpop.permute.xlu0 %2163
    %2167 = vset.pattern.permute.xlu0 0
    %2168 = vperm.xlu0 %2167, %v2064
    %v2169 = vpop.permute.xlu0 %2168
    %2172 = vset.pattern.permute.xlu0 0
    %2173 = vperm.xlu0 %2172, %v2065
    %v2174 = vpop.permute.xlu0 %2173
    %2177 = vset.pattern.permute.xlu0 0
    %2178 = vperm.xlu0 %2177, %v2066
    %v2179 = vpop.permute.xlu0 %2178
    %2182 = vset.pattern.permute.xlu0 0
    %2183 = vperm.xlu0 %2182, %v2067
    %v2184 = vpop.permute.xlu0 %2183
    %2187 = vset.pattern.permute.xlu0 0
    %2188 = vperm.xlu0 %2187, %v2068
    %v2189 = vpop.permute.xlu0 %2188
    %2192 = vset.pattern.permute.xlu0 0
    %2193 = vperm.xlu0 %2192, %v2069
    %v2194 = vpop.permute.xlu0 %2193
    %2197 = vset.pattern.permute.xlu0 0
    %2198 = vperm.xlu0 %2197, %v2070
    %v2199 = vpop.permute.xlu0 %2198
    %2202 = vset.pattern.permute.xlu0 0
    %2203 = vperm.xlu0 %2202, %v2071
    %v2204 = vpop.permute.xlu0 %2203
    %2207 = vset.pattern.permute.xlu0 0
    %2208 = vperm.xlu0 %2207, %v2072
    %v2209 = vpop.permute.xlu0 %2208
    %v2211 = vmul.f32 %v2099, %v2073
    %v2212 = vmul.f32 %v2104, %v2074
    %v2213 = vmul.f32 %v2109, %v2075
    %v2214 = vmul.f32 %v2114, %v2076
    %v2215 = vmul.f32 %v2119, %v2077
    %v2216 = vmul.f32 %v2124, %v2078
    %v2217 = vmul.f32 %v2129, %v2079
    %v2218 = vmul.f32 %v2134, %v2080
    %v2219 = vmul.f32 %v2139, %v2081
    %v2220 = vmul.f32 %v2144, %v2082
    %v2221 = vmul.f32 %v2149, %v2083
    %v2222 = vmul.f32 %v2154, %v2084
    %v2223 = vmul.f32 %v2159, %v2085
    %v2224 = vmul.f32 %v2164, %v2086
    %v2225 = vmul.f32 %v2169, %v2087
    %v2226 = vmul.f32 %v2174, %v2088
    %v2227 = vmul.f32 %v2179, %v2089
    %v2228 = vmul.f32 %v2184, %v2090
    %v2229 = vmul.f32 %v2189, %v2091
    %v2230 = vmul.f32 %v2194, %v2092
    %v2231 = vmul.f32 %v2199, %v2093
    %v2232 = vmul.f32 %v2204, %v2094
    %v2233 = vmul.f32 %v2209, %v2095
    %s2234 = scalar_lea.vmem %s5, 184
    %v2235 = vld [vmem:[%s2234] sm:$0xff]
    %v2236 = vld [vmem:[%s2234 + $0x8] sm:$0xff]
    %v2237 = vld [vmem:[%s2234 + $0x10] sm:$0xff]
    %v2238 = vld [vmem:[%s2234 + $0x18] sm:$0xff]
    %v2239 = vld [vmem:[%s2234 + $0x20] sm:$0xff]
    %v2240 = vld [vmem:[%s2234 + $0x28] sm:$0xff]
    %v2241 = vld [vmem:[%s2234 + $0x30] sm:$0xff]
    %v2242 = vld [vmem:[%s2234 + $0x38] sm:$0xff]
    %v2243 = vld [vmem:[%s2234 + $0x40] sm:$0xff]
    %v2244 = vld [vmem:[%s2234 + $0x48] sm:$0xff]
    %v2245 = vld [vmem:[%s2234 + $0x50] sm:$0xff]
    %v2246 = vld [vmem:[%s2234 + $0x58] sm:$0xff]
    %v2247 = vld [vmem:[%s2234 + $0x60] sm:$0xff]
    %v2248 = vld [vmem:[%s2234 + $0x68] sm:$0xff]
    %v2249 = vld [vmem:[%s2234 + $0x70] sm:$0xff]
    %v2250 = vld [vmem:[%s2234 + $0x78] sm:$0xff]
    %v2251 = vld [vmem:[%s2234 + $0x80] sm:$0xff]
    %v2252 = vld [vmem:[%s2234 + $0x88] sm:$0xff]
    %v2253 = vld [vmem:[%s2234 + $0x90] sm:$0xff]
    %v2254 = vld [vmem:[%s2234 + $0x98] sm:$0xff]
    %v2255 = vld [vmem:[%s2234 + $0xa0] sm:$0xff]
    %v2256 = vld [vmem:[%s2234 + $0xa8] sm:$0xff]
    %v2257 = vld [vmem:[%s2234 + $0xb0] sm:$0xff]
    %2258 = vset.pattern.permute.xlu0 1
    %2259 = vperm.xlu0 %2258, %v2050
    %v2260 = vpop.permute.xlu0 %2259
    %2262 = vset.pattern.permute.xlu0 1
    %2263 = vperm.xlu0 %2262, %v2051
    %v2264 = vpop.permute.xlu0 %2263
    %2266 = vset.pattern.permute.xlu0 1
    %2267 = vperm.xlu0 %2266, %v2052
    %v2268 = vpop.permute.xlu0 %2267
    %2270 = vset.pattern.permute.xlu0 1
    %2271 = vperm.xlu0 %2270, %v2053
    %v2272 = vpop.permute.xlu0 %2271
    %2274 = vset.pattern.permute.xlu0 1
    %2275 = vperm.xlu0 %2274, %v2054
    %v2276 = vpop.permute.xlu0 %2275
    %2278 = vset.pattern.permute.xlu0 1
    %2279 = vperm.xlu0 %2278, %v2055
    %v2280 = vpop.permute.xlu0 %2279
    %2282 = vset.pattern.permute.xlu0 1
    %2283 = vperm.xlu0 %2282, %v2056
    %v2284 = vpop.permute.xlu0 %2283
    %2286 = vset.pattern.permute.xlu0 1
    %2287 = vperm.xlu0 %2286, %v2057
    %v2288 = vpop.permute.xlu0 %2287
    %2290 = vset.pattern.permute.xlu0 1
    %2291 = vperm.xlu0 %2290, %v2058
    %v2292 = vpop.permute.xlu0 %2291
    %2294 = vset.pattern.permute.xlu0 1
    %2295 = vperm.xlu0 %2294, %v2059
    %v2296 = vpop.permute.xlu0 %2295
    %2298 = vset.pattern.permute.xlu0 1
    %2299 = vperm.xlu0 %2298, %v2060
    %v2300 = vpop.permute.xlu0 %2299
    %2302 = vset.pattern.permute.xlu0 1
    %2303 = vperm.xlu0 %2302, %v2061
    %v2304 = vpop.permute.xlu0 %2303
    %2306 = vset.pattern.permute.xlu0 1
    %2307 = vperm.xlu0 %2306, %v2062
    %v2308 = vpop.permute.xlu0 %2307
    %2310 = vset.pattern.permute.xlu0 1
    %2311 = vperm.xlu0 %2310, %v2063
    %v2312 = vpop.permute.xlu0 %2311
    %2314 = vset.pattern.permute.xlu0 1
    %2315 = vperm.xlu0 %2314, %v2064
    %v2316 = vpop.permute.xlu0 %2315
    %2318 = vset.pattern.permute.xlu0 1
    %2319 = vperm.xlu0 %2318, %v2065
    %v2320 = vpop.permute.xlu0 %2319
    %2322 = vset.pattern.permute.xlu0 1
    %2323 = vperm.xlu0 %2322, %v2066
    %v2324 = vpop.permute.xlu0 %2323
    %2326 = vset.pattern.permute.xlu0 1
    %2327 = vperm.xlu0 %2326, %v2067
    %v2328 = vpop.permute.xlu0 %2327
    %2330 = vset.pattern.permute.xlu0 1
    %2331 = vperm.xlu0 %2330, %v2068
    %v2332 = vpop.permute.xlu0 %2331
    %2334 = vset.pattern.permute.xlu0 1
    %2335 = vperm.xlu0 %2334, %v2069
    %v2336 = vpop.permute.xlu0 %2335
    %2338 = vset.pattern.permute.xlu0 1
    %2339 = vperm.xlu0 %2338, %v2070
    %v2340 = vpop.permute.xlu0 %2339
    %2342 = vset.pattern.permute.xlu0 1
    %2343 = vperm.xlu0 %2342, %v2071
    %v2344 = vpop.permute.xlu0 %2343
    %2346 = vset.pattern.permute.xlu0 1
    %2347 = vperm.xlu0 %2346, %v2072
    %v2348 = vpop.permute.xlu0 %2347
    %v2350 = vmul.f32 %v2260, %v2235
    %v2351 = vmul.f32 %v2264, %v2236
    %v2352 = vmul.f32 %v2268, %v2237
    %v2353 = vmul.f32 %v2272, %v2238
    %v2354 = vmul.f32 %v2276, %v2239
    %v2355 = vmul.f32 %v2280, %v2240
    %v2356 = vmul.f32 %v2284, %v2241
    %v2357 = vmul.f32 %v2288, %v2242
    %v2358 = vmul.f32 %v2292, %v2243
    %v2359 = vmul.f32 %v2296, %v2244
    %v2360 = vmul.f32 %v2300, %v2245
    %v2361 = vmul.f32 %v2304, %v2246
    %v2362 = vmul.f32 %v2308, %v2247
    %v2363 = vmul.f32 %v2312, %v2248
    %v2364 = vmul.f32 %v2316, %v2249
    %v2365 = vmul.f32 %v2320, %v2250
    %v2366 = vmul.f32 %v2324, %v2251
    %v2367 = vmul.f32 %v2328, %v2252
    %v2368 = vmul.f32 %v2332, %v2253
    %v2369 = vmul.f32 %v2336, %v2254
    %v2370 = vmul.f32 %v2340, %v2255
    %v2371 = vmul.f32 %v2344, %v2256
    %v2372 = vmul.f32 %v2348, %v2257
    %v2373 = vadd.f32 %v2211, %v2350
    %v2374 = vadd.f32 %v2212, %v2351
    %v2375 = vadd.f32 %v2213, %v2352
    %v2376 = vadd.f32 %v2214, %v2353
    %v2377 = vadd.f32 %v2215, %v2354
    %v2378 = vadd.f32 %v2216, %v2355
    %v2379 = vadd.f32 %v2217, %v2356
    %v2380 = vadd.f32 %v2218, %v2357
    %v2381 = vadd.f32 %v2219, %v2358
    %v2382 = vadd.f32 %v2220, %v2359
    %v2383 = vadd.f32 %v2221, %v2360
    %v2384 = vadd.f32 %v2222, %v2361
    %v2385 = vadd.f32 %v2223, %v2362
    %v2386 = vadd.f32 %v2224, %v2363
    %v2387 = vadd.f32 %v2225, %v2364
    %v2388 = vadd.f32 %v2226, %v2365
    %v2389 = vadd.f32 %v2227, %v2366
    %v2390 = vadd.f32 %v2228, %v2367
    %v2391 = vadd.f32 %v2229, %v2368
    %v2392 = vadd.f32 %v2230, %v2369
    %v2393 = vadd.f32 %v2231, %v2370
    %v2394 = vadd.f32 %v2232, %v2371
    %v2395 = vadd.f32 %v2233, %v2372
    %v2396 = vlaneseq
    %v2397 = vand.u32 %v2396, 127
    %v2398 = vadd.s32 %v2397, 128
    %v2399 = vlaneseq
    %v2400 = vshrl.u32 %v2399, 7
    %v2401 = vmul.u32 %v2400, 104
    %vm2402 = vcmp.ge.s32.totalorder %v2397, %v2401
    %vm2403 = vcmp.ge.s32.totalorder %v2398, %v2401
    %v2404 = vadd.s32 %v2400, 1
    %v2405 = vmul.u32 %v2404, 104
    %vm2406 = vcmp.lt.s32.totalorder %v2397, %v2405
    %vm2407 = vcmp.lt.s32.totalorder %v2398, %v2405
    %vm2408 = vmand %vm2402, %vm2406
    %vm2409 = vmand %vm2403, %vm2407
    %v2410 = vsel %vm2408, 1, 0
    %v2411 = vsel %vm2409, 1, 0
    %v2412 = vcvt.s32.f32 %v2410
    %v2413 = vcvt.s32.f32 %v2411
    %v2414 = vld [vmem:[%s6] sm:$0x1]
    %v2416 = vperm.slane %v2414, 0
    %vm2418 = vcmask 457728
    %v2420 = vsel %vm2418, %v2413, 0
    %2422 = vmatpush.msra.mxu0 %v2388
    %2423 = vmatpush.msra.mxu0 %v2387
    %2424 = vmatpush.msra.mxu0 %v2386
    %2425 = vmatpush.msra.mxu0 %v2385
    %2426 = vmatpush.msra.mxu0 %v2384
    %2427 = vmatpush.msra.mxu0 %v2383
    %2428 = vmatpush.msra.mxu0 %v2382
    %2429 = vmatpush.msra.mxu0 %v2381
    %2430 = vmatpush.msra.mxu0 %v2380
    %2431 = vmatpush.msra.mxu0 %v2379
    %2432 = vmatpush.msra.mxu0 %v2378
    %2433 = vmatpush.msra.mxu0 %v2377
    %2434 = vmatpush.msra.mxu0 %v2376
    %2435 = vmatpush.msra.mxu0 %v2375
    %2436 = vmatpush.msra.mxu0 %v2374
    %2437 = vmatpush.msra.mxu0 %v2373
    %2438 = vmatmul.f32.gmra.mxu0 %v2412
    %v2439 = vpop.f32.mrf.mxu0
    %v2440 = vadd.f32 %v2416, %v2439
    %2441 = vdwg.mxu0
    %2442 = vmatpush.msra.mxu0 0.0
    %2443 = vmatpush.msra.mxu0 0.0
    %2444 = vmatpush.msra.mxu0 0.0
    %2445 = vmatpush.msra.mxu0 0.0
    %2446 = vmatpush.msra.mxu0 0.0
    %2447 = vmatpush.msra.mxu0 0.0
    %2448 = vmatpush.msra.mxu0 0.0
    %2449 = vmatpush.msra.mxu0 0.0
    %2450 = vmatpush.msra.mxu0 0.0
    %2451 = vmatpush.msra.mxu0 %v2395
    %2452 = vmatpush.msra.mxu0 %v2394
    %2453 = vmatpush.msra.mxu0 %v2393
    %2454 = vmatpush.msra.mxu0 %v2392
    %2455 = vmatpush.msra.mxu0 %v2391
    %2456 = vmatpush.msra.mxu0 %v2390
    %2457 = vmatpush.msra.mxu0 %v2389
    %2458 = vmatmul.f32.gmra.mxu0 %v2420
    %v2459 = vpop.f32.mrf.mxu0
    %v2460 = vadd.f32 %v2440, %v2459
    %2461 = vdwg.mxu0
    %vm2462 = vcmask 17408
    %2463 = vst.msk [vmem:[#allocation2] sm:$0x3] %vm2462, %v2460
    // Predicated region
    $region30: #{tpu_custom_call.1} parent=1 // pred_check
      _
    $region31: #{tpu_custom_call.1} parent=1 // pred_check_branch
      %2465 = sbr.rel (0) target = $region33
    $region32: #{tpu_custom_call.1} parent=1 // pred_region
      %2467 = vsyncadd [#allocation3], 0
      %s2469 = sshll.u32 [#allocation2], 4
      %s2470 = int_to_ptr.vmem [resolvable:$true] %s2469
      %s2471 = sshll.u32 %s7, 4
      %s2472 = int_to_ptr.hbm [resolvable:$true] %s2471
      %2474 = dma.vmem_to_hbm [thread:$0]  %s2470, 32, %s2472, [#allocation3]
    $region33: #{tpu_custom_call.1} parent=1 // pred_fallthru
      _
    // Predicated region
    $region34: #{tpu_custom_call.1} parent=1 // pred_check
      _
    $region35: #{tpu_custom_call.1} parent=1 // pred_check_branch
      %2476 = sbr.rel (0) target = $region37
    $region36: #{tpu_custom_call.1} parent=1 // pred_region
      %2478 = dma.done [#allocation3], 32
    $region37: #{tpu_custom_call.1} parent=1 // pred_fallthru
      _
    %2479 = vsyncpa [#allocation3], 1

</llo_original>
